<compile_context>
chip_gen: v7x
topology: tpu7x:2x2x1
jax: 0.10.0
libtpu: 0.0.40
codegen_flags: <defaults>
</compile_context>

<pallas_src>
import functools

import jax
import jax.numpy as jnp
from jax import lax
from jax.experimental import pallas as pl
from jax.experimental.pallas import tpu as pltpu


def _round_up(x, m):
    return (x + m - 1) // m * m


def _pick_tq(n):
    """Query-tile width: full N when small, else a lane-dense divisor of N."""
    if n <= 512:
        return n
    for tq in (512, 384, 256, 128):
        if n % tq == 0:
            return tq
    # TODO(synk): pad the spatial dim for very large N not divisible by 128.
    return n


def _pick_bblk(b, c, n, tq, itemsize):
    """Batch elements per grid step: amortize ~0.35us/step, cap VMEM use."""
    budget = 8 * 1024 * 1024
    for cand in (8, 4, 2):
        io_bytes = 2 * cand * c * (n + 2 * tq) * max(itemsize, 4)  # dbl-buffered blocks
        scratch = 2 * n * tq * 4                                   # energy / exp temps
        if b % cand == 0 and io_bytes + scratch <= budget:
            return cand
    return 1


def _self_attn_kernel(x_q_ref, x_kv_ref, wq_ref, bq_ref, wkv_ref, bkv_ref,
                      gamma_ref, o_ref, *, b_blk, c8p, c, approx_recip):
    """One grid step: `b_blk` batch elements x one query tile.

    x_q_ref:  (B_BLK, C, TQ)  query columns of x (channels-first)
    x_kv_ref: (B_BLK, C, N)   full spatial extent (keys / values source)
    wq_ref:   (C8P, C)        query weight, zero-padded to C8P sublanes
    bq_ref:   (C8P, 1)
    wkv_ref:  (C8P + C, C)    fused [Wk ; zero-pad ; Wv]
    bkv_ref:  (C8P + C, 1)
    gamma_ref:(1, 1)          SMEM scalar
    o_ref:    (B_BLK, C, TQ)
    """
    gamma = gamma_ref[0, 0]

    for bb in range(b_blk):                       # static unroll, b_blk <= 8
        x_kv = x_kv_ref[bb]                       # (C, N)
        x_q = x_q_ref[bb]                         # (C, TQ)
        cdt = x_kv.dtype                          # MXU operand dtype (f32 / bf16)

        # Fused K|V projection: one weight-on-left matmul, lane dim = N.
        # NOTE: recomputed per query tile; cache in VMEM scratch if N >> TQ.
        kv = jnp.dot(wkv_ref[...], x_kv,
                     preferred_element_type=jnp.float32) + bkv_ref[...]      # (C8P+C, N)
        k = kv[0:c8p]                             # (C8P, N)  rows >= C8 are exact zeros
        v = kv[c8p:c8p + c]                       # (C,   N)

        # Query projection on the tiled query columns.
        q = jnp.dot(wq_ref[...], x_q,
                    preferred_element_type=jnp.float32) + bq_ref[...]        # (C8P, TQ)

        # energy[j, i] = <k_j, q_i>: contract the channel axis directly.
        energy = lax.dot_general(
            k.astype(cdt), q.astype(cdt),
            (((0,), (0,)), ((), ())),
            preferred_element_type=jnp.float32)                              # (N, TQ)

        # Softmax over keys (sublane axis); normalization deferred past the
        # PV matmul so it costs C*TQ multiplies instead of N*TQ.
        m = jnp.max(energy, axis=0, keepdims=True)                           # (1, TQ)
        e = jnp.exp(energy - m)                                              # (N, TQ)
        denom = jnp.sum(e, axis=0, keepdims=True)                            # (1, TQ)

        pv = jnp.dot(v.astype(cdt), e.astype(cdt),
                     preferred_element_type=jnp.float32)                     # (C, TQ)
        out = pv * pl.reciprocal(denom, approx=approx_recip)                 # (C, TQ)

        o_ref[bb] = (gamma * out + x_q.astype(jnp.float32)).astype(o_ref.dtype)


def self_attn_pallas(x_nchw, wq, bq, wk, bk, wv, bv, gamma, *,
                     compute_dtype=None, approx_recip=True):
    """Self_Attn forward.  x_nchw: (B, C, W, H) -> (B, C, W, H).

    compute_dtype: optional dtype (e.g. jnp.bfloat16) for the MXU operands
      (x and projection weights); accumulation / softmax / residual stay f32.
    """
    B, C, W, H = x_nchw.shape
    N = W * H
    C8 = wq.shape[0]                               # in_dim // 8
    C8P = _round_up(max(C8, 1), 8)                 # sublane-aligned q/k channels
    CKV = C8P + C

    out_dtype = x_nchw.dtype
    cdt = jnp.dtype(compute_dtype) if compute_dtype is not None else jnp.dtype(out_dtype)

    # NCHW -> (B, C, N) is a pure reshape (W, H contiguous): no transpose.
    x_cn = x_nchw.reshape(B, C, N).astype(cdt)

    # Conv 1x1 weights (Cout, Cin, 1, 1) -> weight-on-left matmul weights.
    # K and V fused into one weight; zero padding rows contribute exact zeros.
    wq2 = wq.reshape(C8, C).astype(cdt)
    wk2 = wk.reshape(C8, C).astype(cdt)
    wv2 = wv.reshape(C, C).astype(cdt)
    w_q = jnp.zeros((C8P, C), cdt).at[:C8].set(wq2)
    w_kv = jnp.zeros((CKV, C), cdt).at[:C8].set(wk2).at[C8P:].set(wv2)
    b_q = jnp.zeros((C8P, 1), jnp.float32).at[:C8, 0].set(bq.astype(jnp.float32))
    b_kv = (jnp.zeros((CKV, 1), jnp.float32)
            .at[:C8, 0].set(bk.astype(jnp.float32))
            .at[C8P:, 0].set(bv.astype(jnp.float32)))
    gamma_sc = jnp.asarray(gamma, jnp.float32).reshape(1, 1)

    TQ = _pick_tq(N)
    B_BLK = _pick_bblk(B, C, N, TQ, cdt.itemsize)
    grid = (B // B_BLK, N // TQ)

    kernel = functools.partial(_self_attn_kernel, b_blk=B_BLK, c8p=C8P, c=C,
                               approx_recip=approx_recip)

    out_cn = pl.pallas_call(
        kernel,
        out_shape=jax.ShapeDtypeStruct((B, C, N), out_dtype),
        grid_spec=pltpu.PrefetchScalarGridSpec(
            num_scalar_prefetch=0,
            grid=grid,
            in_specs=[
                pl.BlockSpec((B_BLK, C, TQ), lambda b, qi: (b, 0, qi)),  # x (queries)
                pl.BlockSpec((B_BLK, C, N), lambda b, qi: (b, 0, 0)),    # x (keys/values)
                pl.BlockSpec((C8P, C), lambda b, qi: (0, 0)),            # Wq (padded)
                pl.BlockSpec((C8P, 1), lambda b, qi: (0, 0)),            # bq
                pl.BlockSpec((CKV, C), lambda b, qi: (0, 0)),            # Wk|Wv fused
                pl.BlockSpec((CKV, 1), lambda b, qi: (0, 0)),            # bk|bv fused
                pl.BlockSpec(memory_space=pltpu.MemorySpace.SMEM),       # gamma scalar
            ],
            out_specs=pl.BlockSpec((B_BLK, C, TQ), lambda b, qi: (b, 0, qi)),
        ),
        compiler_params=pltpu.CompilerParams(
            dimension_semantics=("parallel", "parallel"),
            vmem_limit_bytes=48 * 1024 * 1024,
        ),
    )(x_cn, x_cn, w_q, b_q, w_kv, b_kv, gamma_sc)

    # (B, C, N) -> (B, C, W, H): pure reshape.
    return out_cn.reshape(B, C, W, H)


def _reference(x, wq, bq, wk, bk, wv, bv, gamma):
    """Pure-JAX reference mirroring the PyTorch forward exactly (NCHW)."""
    B, C, W, H = x.shape
    N = W * H

    def conv1x1(x_, w, b):
        return jnp.einsum('bcwh,oc->bowh', x_, w.reshape(w.shape[0], C)) + b[None, :, None, None]

    q = conv1x1(x, wq, bq).reshape(B, -1, N).transpose(0, 2, 1)   # (B, N, C8)
    k = conv1x1(x, wk, bk).reshape(B, -1, N)                      # (B, C8, N)
    energy = jnp.einsum('bnc,bcm->bnm', q, k)                     # (B, N, N)
    attn = jax.nn.softmax(energy, axis=-1)
    v = conv1x1(x, wv, bv).reshape(B, -1, N)                      # (B, C, N)
    out = jnp.einsum('bcj,bij->bci', v, attn).reshape(B, C, W, H)
    return gamma * out + x


if __name__ == "__main__":
    key = jax.random.PRNGKey(0)
    B, C, W, H = 2, 16, 16, 16        # in_dim = 16 -> query/key channels = 2, N = 256
    C8 = C // 8

    kx, k1, k2, k3, k4, k5, k6 = jax.random.split(key, 7)
    x = jax.random.normal(kx, (B, C, W, H), dtype=jnp.float32)

    # Parameter shapes follow nn.Conv2d(in, out, 1): weight (out, in, 1, 1), bias (out,)
    wq = 0.1 * jax.random.normal(k1, (C8, C, 1, 1), dtype=jnp.float32)
    bq = 0.1 * jax.random.normal(k2, (C8,), dtype=jnp.float32)
    wk = 0.1 * jax.random.normal(k3, (C8, C, 1, 1), dtype=jnp.float32)
    bk = 0.1 * jax.random.normal(k4, (C8,), dtype=jnp.float32)
    wv = 0.1 * jax.random.normal(k5, (C, C, 1, 1), dtype=jnp.float32)
    bv = 0.1 * jax.random.normal(k6, (C,), dtype=jnp.float32)
    # PyTorch inits gamma to 0 (output == input); nonzero here so the attention
    # path is actually exercised/verified.
    gamma = jnp.array(0.5, dtype=jnp.float32)

    ref = _reference(x, wq, bq, wk, bk, wv, bv, gamma)

    # f32 path with exact reciprocal: tight check of the math.
    out = self_attn_pallas(x, wq, bq, wk, bk, wv, bv, gamma, approx_recip=False)
    out = jax.block_until_ready(out)
    assert out.shape == (B, C, W, H)
    assert jnp.max(jnp.abs(out - ref)) < 5e-4, "f32 Pallas kernel mismatch vs reference"

    # bf16 MXU-operand path (v5e/v6e feedback) + approximate reciprocal: loose check.
    out_bf16 = self_attn_pallas(x, wq, bq, wk, bk, wv, bv, gamma,
                                compute_dtype=jnp.bfloat16, approx_recip=True)
    out_bf16 = jax.block_until_ready(out_bf16)
    assert jnp.max(jnp.abs(out_bf16 - ref)) < 5e-2, "bf16 Pallas kernel mismatch vs reference"

    print("KERNEL_OK")
</pallas_src>

<mosaic_0001>
module attributes {stable_mosaic.version = 11 : i64} {
  func.func @_self_attn_kernel(%arg0: i32, %arg1: i32, %arg2: memref<2x16x256xf32, #tpu.memory_space<vmem>>, %arg3: memref<2x16x256xf32, #tpu.memory_space<vmem>>, %arg4: memref<8x16xf32, #tpu.memory_space<vmem>>, %arg5: memref<8x1xf32, #tpu.memory_space<vmem>>, %arg6: memref<24x16xf32, #tpu.memory_space<vmem>>, %arg7: memref<24x1xf32, #tpu.memory_space<vmem>>, %arg8: memref<1x1xf32, #tpu.memory_space<smem>>, %arg9: memref<2x16x256xf32, #tpu.memory_space<vmem>>) attributes {dimension_semantics = [#tpu.dimension_semantics<parallel>, #tpu.dimension_semantics<parallel>], iteration_bounds = array<i64: 1, 1>, scalar_prefetch = 0 : i64, scratch_operands = 0 : i64, tpu.core_type = #tpu.core_type<tc>, window_params = [{transform_indices = @transform_0, window_bounds = array<i64: 2, 16, 256>}, {transform_indices = @transform_1, window_bounds = array<i64: 2, 16, 256>}, {pipeline_mode = #tpu.pipeline_mode<synchronous>, transform_indices = @transform_2, window_bounds = array<i64: 8, 16>}, {pipeline_mode = #tpu.pipeline_mode<synchronous>, transform_indices = @transform_3, window_bounds = array<i64: 8, 1>}, {pipeline_mode = #tpu.pipeline_mode<synchronous>, transform_indices = @transform_4, window_bounds = array<i64: 24, 16>}, {pipeline_mode = #tpu.pipeline_mode<synchronous>, transform_indices = @transform_5, window_bounds = array<i64: 24, 1>}, {transform_indices = @transform_6, window_bounds = array<i64: 1, 1>}, {transform_indices = @transform_7, window_bounds = array<i64: 2, 16, 256>}]} {
    %c0 = arith.constant 0 : index
    %c0_0 = arith.constant 0 : index
    %0 = memref.load %arg8[%c0, %c0_0] : memref<1x1xf32, #tpu.memory_space<smem>>
    %c0_1 = arith.constant 0 : index
    %c0_2 = arith.constant 0 : index
    %c0_3 = arith.constant 0 : index
    %1 = vector.load %arg3[%c0_1, %c0_2, %c0_3] : memref<2x16x256xf32, #tpu.memory_space<vmem>>, vector<1x16x256xf32>
    %2 = vector.shape_cast %1 : vector<1x16x256xf32> to vector<16x256xf32>
    %c0_4 = arith.constant 0 : index
    %c0_5 = arith.constant 0 : index
    %c0_6 = arith.constant 0 : index
    %3 = vector.load %arg2[%c0_4, %c0_5, %c0_6] : memref<2x16x256xf32, #tpu.memory_space<vmem>>, vector<1x16x256xf32>
    %4 = vector.shape_cast %3 : vector<1x16x256xf32> to vector<16x256xf32>
    %c0_7 = arith.constant 0 : index
    %c0_8 = arith.constant 0 : index
    %5 = vector.load %arg6[%c0_7, %c0_8] : memref<24x16xf32, #tpu.memory_space<vmem>>, vector<24x16xf32>
    %cst = arith.constant dense<0.000000e+00> : vector<24x256xf32>
    %6 = tpu.matmul %5, %2, %cst {dimension_numbers = #tpu.dot_dimension_numbers<[1], [0], [0], [1], [0, 0, 1, 1], [], []>} : vector<24x16xf32>, vector<16x256xf32>, vector<24x256xf32> -> vector<24x256xf32>
    %c0_9 = arith.constant 0 : index
    %c0_10 = arith.constant 0 : index
    %7 = vector.load %arg7[%c0_9, %c0_10] : memref<24x1xf32, #tpu.memory_space<vmem>>, vector<24x1xf32>
    %8 = vector.broadcast %7 : vector<24x1xf32> to vector<24x256xf32>
    %9 = arith.addf %6, %8 : vector<24x256xf32>
    %10 = vector.extract_strided_slice %9 {offsets = [0, 0], sizes = [8, 256], strides = [1, 1]} : vector<24x256xf32> to vector<8x256xf32>
    %11 = vector.extract_strided_slice %9 {offsets = [8, 0], sizes = [16, 256], strides = [1, 1]} : vector<24x256xf32> to vector<16x256xf32>
    %c0_11 = arith.constant 0 : index
    %c0_12 = arith.constant 0 : index
    %12 = vector.load %arg4[%c0_11, %c0_12] : memref<8x16xf32, #tpu.memory_space<vmem>>, vector<8x16xf32>
    %cst_13 = arith.constant dense<0.000000e+00> : vector<8x256xf32>
    %13 = tpu.matmul %12, %4, %cst_13 {dimension_numbers = #tpu.dot_dimension_numbers<[1], [0], [0], [1], [0, 0, 1, 1], [], []>} : vector<8x16xf32>, vector<16x256xf32>, vector<8x256xf32> -> vector<8x256xf32>
    %c0_14 = arith.constant 0 : index
    %c0_15 = arith.constant 0 : index
    %14 = vector.load %arg5[%c0_14, %c0_15] : memref<8x1xf32, #tpu.memory_space<vmem>>, vector<8x1xf32>
    %15 = vector.broadcast %14 : vector<8x1xf32> to vector<8x256xf32>
    %16 = arith.addf %13, %15 : vector<8x256xf32>
    %cst_16 = arith.constant dense<0.000000e+00> : vector<256x256xf32>
    %17 = tpu.matmul %10, %16, %cst_16 {dimension_numbers = #tpu.dot_dimension_numbers<[0], [0], [1], [1], [0, 1, 1, 1], [], []>} : vector<8x256xf32>, vector<8x256xf32>, vector<256x256xf32> -> vector<256x256xf32>
    %cst_17 = arith.constant dense<0xFF800000> : vector<256xf32>
    %18 = vector.multi_reduction <maximumf>, %17, %cst_17 [0] : vector<256x256xf32> to vector<256xf32>
    %19 = vector.shape_cast %18 : vector<256xf32> to vector<1x256xf32>
    %20 = vector.broadcast %19 : vector<1x256xf32> to vector<256x256xf32>
    %21 = arith.subf %17, %20 : vector<256x256xf32>
    %22 = math.exp %21 : vector<256x256xf32>
    %cst_18 = arith.constant dense<0.000000e+00> : vector<256xf32>
    %23 = vector.multi_reduction <add>, %22, %cst_18 [0] : vector<256x256xf32> to vector<256xf32>
    %24 = vector.shape_cast %23 : vector<256xf32> to vector<1x256xf32>
    %cst_19 = arith.constant dense<0.000000e+00> : vector<16x256xf32>
    %25 = tpu.matmul %11, %22, %cst_19 {dimension_numbers = #tpu.dot_dimension_numbers<[1], [0], [0], [1], [0, 0, 1, 1], [], []>} : vector<16x256xf32>, vector<256x256xf32>, vector<16x256xf32> -> vector<16x256xf32>
    %26 = tpu.reciprocal %24 : vector<1x256xf32> -> vector<1x256xf32>
    %27 = vector.broadcast %26 : vector<1x256xf32> to vector<16x256xf32>
    %28 = arith.mulf %25, %27 : vector<16x256xf32>
    %29 = vector.broadcast %0 : f32 to vector<16x256xf32>
    %30 = arith.mulf %29, %28 : vector<16x256xf32>
    %31 = arith.addf %30, %4 : vector<16x256xf32>
    %c0_20 = arith.constant 0 : index
    %c0_21 = arith.constant 0 : index
    %c0_22 = arith.constant 0 : index
    %32 = vector.load %arg9[%c0_20, %c0_21, %c0_22] : memref<2x16x256xf32, #tpu.memory_space<vmem>>, vector<1x16x256xf32>
    %33 = vector.shape_cast %32 : vector<1x16x256xf32> to vector<16x256xf32>
    %34 = vector.shape_cast %31 : vector<16x256xf32> to vector<1x16x256xf32>
    tpu.vector_store %arg9[%c0_20, %c0_21, %c0_22], %34 {strides = array<i32>} : memref<2x16x256xf32, #tpu.memory_space<vmem>>, vector<1x16x256xf32>,
    %c1 = arith.constant 1 : index
    %c0_23 = arith.constant 0 : index
    %c0_24 = arith.constant 0 : index
    %35 = vector.load %arg3[%c1, %c0_23, %c0_24] : memref<2x16x256xf32, #tpu.memory_space<vmem>>, vector<1x16x256xf32>
    %36 = vector.shape_cast %35 : vector<1x16x256xf32> to vector<16x256xf32>
    %c1_25 = arith.constant 1 : index
    %c0_26 = arith.constant 0 : index
    %c0_27 = arith.constant 0 : index
    %37 = vector.load %arg2[%c1_25, %c0_26, %c0_27] : memref<2x16x256xf32, #tpu.memory_space<vmem>>, vector<1x16x256xf32>
    %38 = vector.shape_cast %37 : vector<1x16x256xf32> to vector<16x256xf32>
    %c0_28 = arith.constant 0 : index
    %c0_29 = arith.constant 0 : index
    %39 = vector.load %arg6[%c0_28, %c0_29] : memref<24x16xf32, #tpu.memory_space<vmem>>, vector<24x16xf32>
    %cst_30 = arith.constant dense<0.000000e+00> : vector<24x256xf32>
    %40 = tpu.matmul %39, %36, %cst_30 {dimension_numbers = #tpu.dot_dimension_numbers<[1], [0], [0], [1], [0, 0, 1, 1], [], []>} : vector<24x16xf32>, vector<16x256xf32>, vector<24x256xf32> -> vector<24x256xf32>
    %c0_31 = arith.constant 0 : index
    %c0_32 = arith.constant 0 : index
    %41 = vector.load %arg7[%c0_31, %c0_32] : memref<24x1xf32, #tpu.memory_space<vmem>>, vector<24x1xf32>
    %42 = vector.broadcast %41 : vector<24x1xf32> to vector<24x256xf32>
    %43 = arith.addf %40, %42 : vector<24x256xf32>
    %44 = vector.extract_strided_slice %43 {offsets = [0, 0], sizes = [8, 256], strides = [1, 1]} : vector<24x256xf32> to vector<8x256xf32>
    %45 = vector.extract_strided_slice %43 {offsets = [8, 0], sizes = [16, 256], strides = [1, 1]} : vector<24x256xf32> to vector<16x256xf32>
    %c0_33 = arith.constant 0 : index
    %c0_34 = arith.constant 0 : index
    %46 = vector.load %arg4[%c0_33, %c0_34] : memref<8x16xf32, #tpu.memory_space<vmem>>, vector<8x16xf32>
    %cst_35 = arith.constant dense<0.000000e+00> : vector<8x256xf32>
    %47 = tpu.matmul %46, %38, %cst_35 {dimension_numbers = #tpu.dot_dimension_numbers<[1], [0], [0], [1], [0, 0, 1, 1], [], []>} : vector<8x16xf32>, vector<16x256xf32>, vector<8x256xf32> -> vector<8x256xf32>
    %c0_36 = arith.constant 0 : index
    %c0_37 = arith.constant 0 : index
    %48 = vector.load %arg5[%c0_36, %c0_37] : memref<8x1xf32, #tpu.memory_space<vmem>>, vector<8x1xf32>
    %49 = vector.broadcast %48 : vector<8x1xf32> to vector<8x256xf32>
    %50 = arith.addf %47, %49 : vector<8x256xf32>
    %cst_38 = arith.constant dense<0.000000e+00> : vector<256x256xf32>
    %51 = tpu.matmul %44, %50, %cst_38 {dimension_numbers = #tpu.dot_dimension_numbers<[0], [0], [1], [1], [0, 1, 1, 1], [], []>} : vector<8x256xf32>, vector<8x256xf32>, vector<256x256xf32> -> vector<256x256xf32>
    %cst_39 = arith.constant dense<0xFF800000> : vector<256xf32>
    %52 = vector.multi_reduction <maximumf>, %51, %cst_39 [0] : vector<256x256xf32> to vector<256xf32>
    %53 = vector.shape_cast %52 : vector<256xf32> to vector<1x256xf32>
    %54 = vector.broadcast %53 : vector<1x256xf32> to vector<256x256xf32>
    %55 = arith.subf %51, %54 : vector<256x256xf32>
    %56 = math.exp %55 : vector<256x256xf32>
    %cst_40 = arith.constant dense<0.000000e+00> : vector<256xf32>
    %57 = vector.multi_reduction <add>, %56, %cst_40 [0] : vector<256x256xf32> to vector<256xf32>
    %58 = vector.shape_cast %57 : vector<256xf32> to vector<1x256xf32>
    %cst_41 = arith.constant dense<0.000000e+00> : vector<16x256xf32>
    %59 = tpu.matmul %45, %56, %cst_41 {dimension_numbers = #tpu.dot_dimension_numbers<[1], [0], [0], [1], [0, 0, 1, 1], [], []>} : vector<16x256xf32>, vector<256x256xf32>, vector<16x256xf32> -> vector<16x256xf32>
    %60 = tpu.reciprocal %58 : vector<1x256xf32> -> vector<1x256xf32>
    %61 = vector.broadcast %60 : vector<1x256xf32> to vector<16x256xf32>
    %62 = arith.mulf %59, %61 : vector<16x256xf32>
    %63 = vector.broadcast %0 : f32 to vector<16x256xf32>
    %64 = arith.mulf %63, %62 : vector<16x256xf32>
    %65 = arith.addf %64, %38 : vector<16x256xf32>
    %c1_42 = arith.constant 1 : index
    %c0_43 = arith.constant 0 : index
    %c0_44 = arith.constant 0 : index
    %66 = vector.load %arg9[%c1_42, %c0_43, %c0_44] : memref<2x16x256xf32, #tpu.memory_space<vmem>>, vector<1x16x256xf32>
    %67 = vector.shape_cast %66 : vector<1x16x256xf32> to vector<16x256xf32>
    %68 = vector.shape_cast %65 : vector<16x256xf32> to vector<1x16x256xf32>
    tpu.vector_store %arg9[%c1_42, %c0_43, %c0_44], %68 {strides = array<i32>} : memref<2x16x256xf32, #tpu.memory_space<vmem>>, vector<1x16x256xf32>,
    return
  }
  func.func @transform_0(%arg0: i32, %arg1: i32) -> (i32, i32, i32) {
    %c0_i32 = arith.constant 0 : i32
    %c0_i32_0 = arith.constant 0 : i32
    return %arg0, %c0_i32, %arg1 : i32, i32, i32
  }
  func.func @transform_1(%arg0: i32, %arg1: i32) -> (i32, i32, i32) {
    %c0_i32 = arith.constant 0 : i32
    %c0_i32_0 = arith.constant 0 : i32
    %c0_i32_1 = arith.constant 0 : i32
    return %arg0, %c0_i32, %c0_i32_0 : i32, i32, i32
  }
  func.func @transform_2(%arg0: i32, %arg1: i32) -> (i32, i32) {
    %c0_i32 = arith.constant 0 : i32
    %c0_i32_0 = arith.constant 0 : i32
    %c0_i32_1 = arith.constant 0 : i32
    return %c0_i32, %c0_i32_0 : i32, i32
  }
  func.func @transform_3(%arg0: i32, %arg1: i32) -> (i32, i32) {
    %c0_i32 = arith.constant 0 : i32
    %c0_i32_0 = arith.constant 0 : i32
    %c0_i32_1 = arith.constant 0 : i32
    return %c0_i32, %c0_i32_0 : i32, i32
  }
  func.func @transform_4(%arg0: i32, %arg1: i32) -> (i32, i32) {
    %c0_i32 = arith.constant 0 : i32
    %c0_i32_0 = arith.constant 0 : i32
    %c0_i32_1 = arith.constant 0 : i32
    return %c0_i32, %c0_i32_0 : i32, i32
  }
  func.func @transform_5(%arg0: i32, %arg1: i32) -> (i32, i32) {
    %c0_i32 = arith.constant 0 : i32
    %c0_i32_0 = arith.constant 0 : i32
    %c0_i32_1 = arith.constant 0 : i32
    return %c0_i32, %c0_i32_0 : i32, i32
  }
  func.func @transform_6(%arg0: i32, %arg1: i32) -> (i32, i32) {
    %c0_i32 = arith.constant 0 : i32
    %c0_i32_0 = arith.constant 0 : i32
    %c0_i32_1 = arith.constant 0 : i32
    return %c0_i32, %c0_i32_0 : i32, i32
  }
  func.func @transform_7(%arg0: i32, %arg1: i32) -> (i32, i32, i32) {
    %c0_i32 = arith.constant 0 : i32
    %c0_i32_0 = arith.constant 0 : i32
    return %arg0, %c0_i32, %arg1 : i32, i32, i32
  }
}

</mosaic_0001>

<llo_original>
// kernel: tpu_custom_call.1
$region0: #{tpu_custom_call.1}
  #allocation0 [shape = 'u32[]', space=smem, size = 0x4, offset = 0x4, fixed_abs, tag = 'smem constant byte address 0x4 - core index']
  #allocation1 [shape = 'u32[144,128]{1,0:T(1,128)}', space=vmem, size = 0x12000, scoped, tag = 'internal scratch']
  #allocation2 [shape = 'f32[1,1]{1,0:T(1,128)S(6)}', space=smem, size = 0x200, scoped, tag = 'scoped memory for tpu_custom_call.1']
  %s0 = inlined_call_operand.vmem [shape: f32[2,16,256], index: 0, kind: input, shape index: {}]
  %s1 = inlined_call_operand.hbm [shape: f32[2,16,256], index: 1, kind: input, shape index: {}]
  %s2 = inlined_call_operand.vmem [shape: f32[8,16], index: 2, kind: input, shape index: {}]
  %s3 = inlined_call_operand.vmem [shape: f32[8,1], index: 3, kind: input, shape index: {}]
  %s4 = inlined_call_operand.vmem [shape: f32[24,16], index: 4, kind: input, shape index: {}]
  %s5 = inlined_call_operand.vmem [shape: f32[24,1], index: 5, kind: input, shape index: {}]
  %s6 = inlined_call_operand.<no memory space> [shape: f32[1,1], index: 6, kind: input, shape index: {}]
  %s7 = inlined_call_operand.hbm [shape: f32[2,16,256], index: 7, kind: output, shape index: {}]
  %s8 = sld [smem:[#allocation0]]
  $region42: #{tpu_custom_call.1} parent=0
    _
  %s10 = ssub.s32 1, %s8
  %s11 = scalar_select 0, %s10, %s8
  %12 = sst [smem:[#allocation2]] %s6
  $region1: #{tpu_custom_call.1} parent=0
    #allocation3 [shape = 'u8[32768]{0}', space=vmem, size = 0x8000, scoped, tag = 'input window, operand 1, single buffered']
    #allocation4 [shape = 's32[1]{0}', space=sflag, size = 0x4, scoped, tag = 'scoped memory for tpu_custom_call.1']
    #allocation5 [shape = 's32[1]{0}', space=sflag, size = 0x4, scoped, tag = 'scoped memory for tpu_custom_call.1']
    #allocation6 [shape = 'u8[32768]{0}', space=vmem, size = 0x8000, scoped, tag = 'output window, operand 0, single buffered']
    %13 = vsyncpa [#allocation4], 0
    %14 = vsyncpa [#allocation5], 0
    // Predicated region
    $region2: #{tpu_custom_call.1} parent=1 // pred_check
      _
    $region3: #{tpu_custom_call.1} parent=1 // pred_check_branch
      %16 = sbr.rel (0) target = $region5
    $region4: #{tpu_custom_call.1} parent=1 // pred_region
      _
    $region5: #{tpu_custom_call.1} parent=1 // pred_fallthru
      _
    // Predicated region
    $region6: #{tpu_custom_call.1} parent=1 // pred_check
      _
    $region7: #{tpu_custom_call.1} parent=1 // pred_check_branch
      %18 = sbr.rel (0) target = $region9
    $region8: #{tpu_custom_call.1} parent=1 // pred_region
      %s20 = ssub.s32 1024, 1024
      %21 = vsyncadd [#allocation4], %s20
      %s22 = sshll.u32 [#allocation3], 4
      %s23 = int_to_ptr.vmem [resolvable:$true] %s22
      %28 = dma.hbm_to_vmem [thread:$0]  %s1, 1024, %s23, [#allocation4], 256, 256, 16
    $region9: #{tpu_custom_call.1} parent=1 // pred_fallthru
      _
    // Predicated region
    $region10: #{tpu_custom_call.1} parent=1 // pred_check
      _
    $region11: #{tpu_custom_call.1} parent=1 // pred_check_branch
      %30 = sbr.rel (0) target = $region13
    $region12: #{tpu_custom_call.1} parent=1 // pred_region
      _
    $region13: #{tpu_custom_call.1} parent=1 // pred_fallthru
      _
    // Predicated region
    $region14: #{tpu_custom_call.1} parent=1 // pred_check
      _
    $region15: #{tpu_custom_call.1} parent=1 // pred_check_branch
      %32 = sbr.rel (0) target = $region17
    $region16: #{tpu_custom_call.1} parent=1 // pred_region
      _
    $region17: #{tpu_custom_call.1} parent=1 // pred_fallthru
      _
    // Predicated region
    $region18: #{tpu_custom_call.1} parent=1 // pred_check
      _
    $region19: #{tpu_custom_call.1} parent=1 // pred_check_branch
      %34 = sbr.rel (0) target = $region21
    $region20: #{tpu_custom_call.1} parent=1 // pred_region
      _
    $region21: #{tpu_custom_call.1} parent=1 // pred_fallthru
      _
    // Predicated region
    $region22: #{tpu_custom_call.1} parent=1 // pred_check
      _
    $region23: #{tpu_custom_call.1} parent=1 // pred_check_branch
      %36 = sbr.rel (0) target = $region25
    $region24: #{tpu_custom_call.1} parent=1 // pred_region
      _
    $region25: #{tpu_custom_call.1} parent=1 // pred_fallthru
      _
    // Predicated region
    $region26: #{tpu_custom_call.1} parent=1 // pred_check
      _
    $region27: #{tpu_custom_call.1} parent=1 // pred_check_branch
      %38 = sbr.rel (0) target = $region29
    $region28: #{tpu_custom_call.1} parent=1 // pred_region
      _
    $region29: #{tpu_custom_call.1} parent=1 // pred_fallthru
      _
    // Predicated region
    $region30: #{tpu_custom_call.1} parent=1 // pred_check
      _
    $region31: #{tpu_custom_call.1} parent=1 // pred_check_branch
      %40 = sbr.rel (0) target = $region33
    $region32: #{tpu_custom_call.1} parent=1 // pred_region
      %41 = dma.done [#allocation4], 1024
    $region33: #{tpu_custom_call.1} parent=1 // pred_fallthru
      _
    %s42 = sld [smem:[#allocation2]]
    %v43 = vld [vmem:[#allocation3] sm:$0xff]
    %v44 = vld [vmem:[#allocation3 + $0x8] sm:$0xff]
    %v45 = vld [vmem:[#allocation3 + $0x10] sm:$0xff]
    %v46 = vld [vmem:[#allocation3 + $0x18] sm:$0xff]
    %v47 = vld [vmem:[%s0] sm:$0xff]
    %v48 = vld [vmem:[%s0 + $0x8] sm:$0xff]
    %v49 = vld [vmem:[%s0 + $0x10] sm:$0xff]
    %v50 = vld [vmem:[%s0 + $0x18] sm:$0xff]
    %v51 = vld [vmem:[%s4] sm:$0xff]
    %v52 = vld [vmem:[%s4 + $0x8] sm:$0xff]
    %v53 = vld [vmem:[%s4 + $0x10] sm:$0xff]
    %v54 = vld [vmem:[%s5] sm:$0xff]
    %v55 = vld [vmem:[%s5 + $0x8] sm:$0xff]
    %v56 = vld [vmem:[%s5 + $0x10] sm:$0xff]
    %58 = vset.pattern.permute.xlu0 0
    %59 = vperm.xlu0 %58, %v54
    %v60 = vpop.permute.xlu0 %59
    %63 = vset.pattern.permute.xlu0 0
    %64 = vperm.xlu0 %63, %v55
    %v65 = vpop.permute.xlu0 %64
    %68 = vset.pattern.permute.xlu0 0
    %69 = vperm.xlu0 %68, %v56
    %v70 = vpop.permute.xlu0 %69
    %vm72 = vcmask 130048
    %v74 = vsel %vm72, %v51, 0
    %v77 = vsel %vm72, %v52, 0
    %v80 = vsel %vm72, %v53, 0
    %82 = vmatprep.subr.mxu0 %v44
    %83 = vmatpush1.msra.mxu0 %v43
    %84 = vmatprep.subr.mxu0 %v46
    %85 = vmatpush1.msra.mxu0 %v45
    %86 = vmatprep.subr.mxu0 0.0
    %87 = vmatpush1.msra.mxu0 0.0
    %88 = vmatprep.subr.mxu0 0.0
    %89 = vmatpush1.msra.mxu0 0.0
    %90 = vmatprep.subr.mxu0 0.0
    %91 = vmatpush1.msra.mxu0 0.0
    %92 = vmatprep.subr.mxu0 0.0
    %93 = vmatpush1.msra.mxu0 0.0
    %94 = vmatprep.subr.mxu0 0.0
    %95 = vmatpush1.msra.mxu0 0.0
    %96 = vmatprep.subr.mxu0 0.0
    %97 = vmatpush1.msra.mxu0 0.0
    %98 = vmatprep.subr.mxu0 0.0
    %99 = vmatpush1.msra.mxu0 0.0
    %100 = vmatprep.subr.mxu0 0.0
    %101 = vmatpush1.msra.mxu0 0.0
    %102 = vmatprep.subr.mxu0 0.0
    %103 = vmatpush1.msra.mxu0 0.0
    %104 = vmatprep.subr.mxu0 0.0
    %105 = vmatpush1.msra.mxu0 0.0
    %106 = vmatprep.subr.mxu0 0.0
    %107 = vmatpush1.msra.mxu0 0.0
    %108 = vmatprep.subr.mxu0 0.0
    %109 = vmatpush1.msra.mxu0 0.0
    %110 = vmatprep.subr.mxu0 0.0
    %111 = vmatpush1.msra.mxu0 0.0
    %112 = vmatprep.subr.mxu0 0.0
    %113 = vmatpush1.msra.mxu0 0.0
    %114 = vmatprep.subr.mxu0 0.0
    %115 = vmatpush1.msra.mxu0 0.0
    %116 = vmatprep.subr.mxu0 0.0
    %117 = vmatpush1.msra.mxu0 0.0
    %118 = vmatprep.subr.mxu0 0.0
    %119 = vmatpush1.msra.mxu0 0.0
    %120 = vmatprep.subr.mxu0 0.0
    %121 = vmatpush1.msra.mxu0 0.0
    %122 = vmatprep.subr.mxu0 0.0
    %123 = vmatpush1.msra.mxu0 0.0
    %124 = vmatprep.subr.mxu0 0.0
    %125 = vmatpush1.msra.mxu0 0.0
    %126 = vmatprep.subr.mxu0 0.0
    %127 = vmatpush1.msra.mxu0 0.0
    %128 = vmatprep.subr.mxu0 0.0
    %129 = vmatpush1.msra.mxu0 0.0
    %130 = vmatprep.subr.mxu0 0.0
    %131 = vmatpush1.msra.mxu0 0.0
    %132 = vmatprep.subr.mxu0 0.0
    %133 = vmatpush1.msra.mxu0 0.0
    %134 = vmatprep.subr.mxu0 0.0
    %135 = vmatpush1.msra.mxu0 0.0
    %136 = vmatprep.subr.mxu0 0.0
    %137 = vmatpush1.msra.mxu0 0.0
    %138 = vmatprep.subr.mxu0 0.0
    %139 = vmatpush1.msra.mxu0 0.0
    %140 = vmatprep.subr.mxu0 0.0
    %141 = vmatpush1.msra.mxu0 0.0
    %142 = vmatprep.subr.mxu0 0.0
    %143 = vmatpush1.msra.mxu0 0.0
    %144 = vmatprep.subr.mxu0 0.0
    %145 = vmatpush1.msra.mxu0 0.0
    %146 = vmatprep.mubr.f32.mxu0 0.0
    %147 = vmatmul.mubr.f32.gmra.mrb[0].mxu0 %v74
    %v148 = vpop.f32.mrb[0].mxu0
    %v149 = vadd.f32 %v60, %v148
    %v150 = vpop.f32.mrb[0].mxu0
    %v151 = vadd.f32 %v60, %v150
    %152 = vmatprep.mubr.f32.mxu0 0.0
    %153 = vmatmul.mubr.f32.gmra.mrb[0].mxu0 %v77
    %v154 = vpop.f32.mrb[0].mxu0
    %v155 = vadd.f32 %v65, %v154
    %v156 = vpop.f32.mrb[0].mxu0
    %v157 = vadd.f32 %v65, %v156
    %158 = vmatprep.mubr.f32.mxu0 0.0
    %159 = vmatmul.mubr.f32.gmra.mrb[0].mxu0 %v80
    %v160 = vpop.f32.mrb[0].mxu0
    %v161 = vadd.f32 %v70, %v160
    %v162 = vpop.f32.mrb[0].mxu0
    %v163 = vadd.f32 %v70, %v162
    %164 = vdwg.mxu0
    %v165 = vld [vmem:[%s2] sm:$0xff]
    %v166 = vld [vmem:[%s3] sm:$0xff]
    %168 = vset.pattern.permute.xlu0 0
    %169 = vperm.xlu0 %168, %v166
    %v170 = vpop.permute.xlu0 %169
    %v173 = vsel %vm72, %v165, 0
    %175 = vmatprep.subr.mxu0 %v48
    %176 = vmatpush1.msra.mxu0 %v47
    %177 = vmatprep.subr.mxu0 %v50
    %178 = vmatpush1.msra.mxu0 %v49
    %179 = vmatprep.subr.mxu0 0.0
    %180 = vmatpush1.msra.mxu0 0.0
    %181 = vmatprep.subr.mxu0 0.0
    %182 = vmatpush1.msra.mxu0 0.0
    %183 = vmatprep.subr.mxu0 0.0
    %184 = vmatpush1.msra.mxu0 0.0
    %185 = vmatprep.subr.mxu0 0.0
    %186 = vmatpush1.msra.mxu0 0.0
    %187 = vmatprep.subr.mxu0 0.0
    %188 = vmatpush1.msra.mxu0 0.0
    %189 = vmatprep.subr.mxu0 0.0
    %190 = vmatpush1.msra.mxu0 0.0
    %191 = vmatprep.subr.mxu0 0.0
    %192 = vmatpush1.msra.mxu0 0.0
    %193 = vmatprep.subr.mxu0 0.0
    %194 = vmatpush1.msra.mxu0 0.0
    %195 = vmatprep.subr.mxu0 0.0
    %196 = vmatpush1.msra.mxu0 0.0
    %197 = vmatprep.subr.mxu0 0.0
    %198 = vmatpush1.msra.mxu0 0.0
    %199 = vmatprep.subr.mxu0 0.0
    %200 = vmatpush1.msra.mxu0 0.0
    %201 = vmatprep.subr.mxu0 0.0
    %202 = vmatpush1.msra.mxu0 0.0
    %203 = vmatprep.subr.mxu0 0.0
    %204 = vmatpush1.msra.mxu0 0.0
    %205 = vmatprep.subr.mxu0 0.0
    %206 = vmatpush1.msra.mxu0 0.0
    %207 = vmatprep.subr.mxu0 0.0
    %208 = vmatpush1.msra.mxu0 0.0
    %209 = vmatprep.subr.mxu0 0.0
    %210 = vmatpush1.msra.mxu0 0.0
    %211 = vmatprep.subr.mxu0 0.0
    %212 = vmatpush1.msra.mxu0 0.0
    %213 = vmatprep.subr.mxu0 0.0
    %214 = vmatpush1.msra.mxu0 0.0
    %215 = vmatprep.subr.mxu0 0.0
    %216 = vmatpush1.msra.mxu0 0.0
    %217 = vmatprep.subr.mxu0 0.0
    %218 = vmatpush1.msra.mxu0 0.0
    %219 = vmatprep.subr.mxu0 0.0
    %220 = vmatpush1.msra.mxu0 0.0
    %221 = vmatprep.subr.mxu0 0.0
    %222 = vmatpush1.msra.mxu0 0.0
    %223 = vmatprep.subr.mxu0 0.0
    %224 = vmatpush1.msra.mxu0 0.0
    %225 = vmatprep.subr.mxu0 0.0
    %226 = vmatpush1.msra.mxu0 0.0
    %227 = vmatprep.subr.mxu0 0.0
    %228 = vmatpush1.msra.mxu0 0.0
    %229 = vmatprep.subr.mxu0 0.0
    %230 = vmatpush1.msra.mxu0 0.0
    %231 = vmatprep.subr.mxu0 0.0
    %232 = vmatpush1.msra.mxu0 0.0
    %233 = vmatprep.subr.mxu0 0.0
    %234 = vmatpush1.msra.mxu0 0.0
    %235 = vmatprep.subr.mxu0 0.0
    %236 = vmatpush1.msra.mxu0 0.0
    %237 = vmatprep.subr.mxu0 0.0
    %238 = vmatpush1.msra.mxu0 0.0
    %239 = vmatprep.mubr.f32.mxu0 0.0
    %240 = vmatmul.mubr.f32.gmra.mrb[0].mxu0 %v173
    %v241 = vpop.f32.mrb[0].mxu0
    %v242 = vadd.f32 %v170, %v241
    %v243 = vpop.f32.mrb[0].mxu0
    %v244 = vadd.f32 %v170, %v243
    %245 = vdwg.mxu0
    %246 = vxpose.xlu0.b32.start [1/16] %v149, 128
    %247 = vxpose.xlu0.b32.cont [2/16] 0.0, 128
    %248 = vxpose.xlu0.b32.cont [3/16] 0.0, 128
    %249 = vxpose.xlu0.b32.cont [4/16] 0.0, 128
    %250 = vxpose.xlu0.b32.cont [5/16] 0.0, 128
    %251 = vxpose.xlu0.b32.cont [6/16] 0.0, 128
    %252 = vxpose.xlu0.b32.cont [7/16] 0.0, 128
    %253 = vxpose.xlu0.b32.cont [8/16] 0.0, 128
    %254 = vxpose.xlu0.b32.cont [9/16] 0.0, 128
    %255 = vxpose.xlu0.b32.cont [10/16] 0.0, 128
    %256 = vxpose.xlu0.b32.cont [11/16] 0.0, 128
    %257 = vxpose.xlu0.b32.cont [12/16] 0.0, 128
    %258 = vxpose.xlu0.b32.cont [13/16] 0.0, 128
    %259 = vxpose.xlu0.b32.cont [14/16] 0.0, 128
    %260 = vxpose.xlu0.b32.cont [15/16] 0.0, 128
    %261 = vxpose.xlu0.b32.end [16/16] 0.0, 128
    %v262 = vpop.trf.xlu0
    %v263 = vpop.trf.xlu0
    %v264 = vpop.trf.xlu0
    %v265 = vpop.trf.xlu0
    %v266 = vpop.trf.xlu0
    %v267 = vpop.trf.xlu0
    %v268 = vpop.trf.xlu0
    %v269 = vpop.trf.xlu0
    %v270 = vpop.trf.xlu0
    %v271 = vpop.trf.xlu0
    %v272 = vpop.trf.xlu0
    %v273 = vpop.trf.xlu0
    %v274 = vpop.trf.xlu0
    %v275 = vpop.trf.xlu0
    %v276 = vpop.trf.xlu0
    %v277 = vpop.trf.xlu0
    %278 = vxpose.xlu0.b32.start [1/16] %v151, 128
    %279 = vxpose.xlu0.b32.cont [2/16] 0.0, 128
    %280 = vxpose.xlu0.b32.cont [3/16] 0.0, 128
    %281 = vxpose.xlu0.b32.cont [4/16] 0.0, 128
    %282 = vxpose.xlu0.b32.cont [5/16] 0.0, 128
    %283 = vxpose.xlu0.b32.cont [6/16] 0.0, 128
    %284 = vxpose.xlu0.b32.cont [7/16] 0.0, 128
    %285 = vxpose.xlu0.b32.cont [8/16] 0.0, 128
    %286 = vxpose.xlu0.b32.cont [9/16] 0.0, 128
    %287 = vxpose.xlu0.b32.cont [10/16] 0.0, 128
    %288 = vxpose.xlu0.b32.cont [11/16] 0.0, 128
    %289 = vxpose.xlu0.b32.cont [12/16] 0.0, 128
    %290 = vxpose.xlu0.b32.cont [13/16] 0.0, 128
    %291 = vxpose.xlu0.b32.cont [14/16] 0.0, 128
    %292 = vxpose.xlu0.b32.cont [15/16] 0.0, 128
    %293 = vxpose.xlu0.b32.end [16/16] 0.0, 128
    %v294 = vpop.trf.xlu0
    %v295 = vpop.trf.xlu0
    %v296 = vpop.trf.xlu0
    %v297 = vpop.trf.xlu0
    %v298 = vpop.trf.xlu0
    %v299 = vpop.trf.xlu0
    %v300 = vpop.trf.xlu0
    %v301 = vpop.trf.xlu0
    %v302 = vpop.trf.xlu0
    %v303 = vpop.trf.xlu0
    %v304 = vpop.trf.xlu0
    %v305 = vpop.trf.xlu0
    %v306 = vpop.trf.xlu0
    %v307 = vpop.trf.xlu0
    %v308 = vpop.trf.xlu0
    %v309 = vpop.trf.xlu0
    %vm310 = vcmask 64512
    %v312 = vsel %vm310, %v262, 0
    %v315 = vsel %vm310, %v263, 0
    %v318 = vsel %vm310, %v264, 0
    %v321 = vsel %vm310, %v265, 0
    %v324 = vsel %vm310, %v266, 0
    %v327 = vsel %vm310, %v267, 0
    %v330 = vsel %vm310, %v268, 0
    %v333 = vsel %vm310, %v269, 0
    %v336 = vsel %vm310, %v270, 0
    %v339 = vsel %vm310, %v271, 0
    %v342 = vsel %vm310, %v272, 0
    %v345 = vsel %vm310, %v273, 0
    %v348 = vsel %vm310, %v274, 0
    %v351 = vsel %vm310, %v275, 0
    %v354 = vsel %vm310, %v276, 0
    %v357 = vsel %vm310, %v277, 0
    %v360 = vsel %vm310, %v294, 0
    %v363 = vsel %vm310, %v295, 0
    %v366 = vsel %vm310, %v296, 0
    %v369 = vsel %vm310, %v297, 0
    %v372 = vsel %vm310, %v298, 0
    %v375 = vsel %vm310, %v299, 0
    %v378 = vsel %vm310, %v300, 0
    %v381 = vsel %vm310, %v301, 0
    %v384 = vsel %vm310, %v302, 0
    %v387 = vsel %vm310, %v303, 0
    %v390 = vsel %vm310, %v304, 0
    %v393 = vsel %vm310, %v305, 0
    %v396 = vsel %vm310, %v306, 0
    %v399 = vsel %vm310, %v307, 0
    %v402 = vsel %vm310, %v308, 0
    %v405 = vsel %vm310, %v309, 0
    %407 = vmatprep.subr.mxu0 %v244
    %408 = vmatpush1.msra.mxu0 %v242
    %409 = vmatprep.subr.mxu0 0.0
    %410 = vmatpush1.msra.mxu0 0.0
    %411 = vmatprep.subr.mxu0 0.0
    %412 = vmatpush1.msra.mxu0 0.0
    %413 = vmatprep.subr.mxu0 0.0
    %414 = vmatpush1.msra.mxu0 0.0
    %415 = vmatprep.subr.mxu0 0.0
    %416 = vmatpush1.msra.mxu0 0.0
    %417 = vmatprep.subr.mxu0 0.0
    %418 = vmatpush1.msra.mxu0 0.0
    %419 = vmatprep.subr.mxu0 0.0
    %420 = vmatpush1.msra.mxu0 0.0
    %421 = vmatprep.subr.mxu0 0.0
    %422 = vmatpush1.msra.mxu0 0.0
    %423 = vmatprep.subr.mxu0 0.0
    %424 = vmatpush1.msra.mxu0 0.0
    %425 = vmatprep.subr.mxu0 0.0
    %426 = vmatpush1.msra.mxu0 0.0
    %427 = vmatprep.subr.mxu0 0.0
    %428 = vmatpush1.msra.mxu0 0.0
    %429 = vmatprep.subr.mxu0 0.0
    %430 = vmatpush1.msra.mxu0 0.0
    %431 = vmatprep.subr.mxu0 0.0
    %432 = vmatpush1.msra.mxu0 0.0
    %433 = vmatprep.subr.mxu0 0.0
    %434 = vmatpush1.msra.mxu0 0.0
    %435 = vmatprep.subr.mxu0 0.0
    %436 = vmatpush1.msra.mxu0 0.0
    %437 = vmatprep.subr.mxu0 0.0
    %438 = vmatpush1.msra.mxu0 0.0
    %439 = vmatprep.subr.mxu0 0.0
    %440 = vmatpush1.msra.mxu0 0.0
    %441 = vmatprep.subr.mxu0 0.0
    %442 = vmatpush1.msra.mxu0 0.0
    %443 = vmatprep.subr.mxu0 0.0
    %444 = vmatpush1.msra.mxu0 0.0
    %445 = vmatprep.subr.mxu0 0.0
    %446 = vmatpush1.msra.mxu0 0.0
    %447 = vmatprep.subr.mxu0 0.0
    %448 = vmatpush1.msra.mxu0 0.0
    %449 = vmatprep.subr.mxu0 0.0
    %450 = vmatpush1.msra.mxu0 0.0
    %451 = vmatprep.subr.mxu0 0.0
    %452 = vmatpush1.msra.mxu0 0.0
    %453 = vmatprep.subr.mxu0 0.0
    %454 = vmatpush1.msra.mxu0 0.0
    %455 = vmatprep.subr.mxu0 0.0
    %456 = vmatpush1.msra.mxu0 0.0
    %457 = vmatprep.subr.mxu0 0.0
    %458 = vmatpush1.msra.mxu0 0.0
    %459 = vmatprep.subr.mxu0 0.0
    %460 = vmatpush1.msra.mxu0 0.0
    %461 = vmatprep.subr.mxu0 0.0
    %462 = vmatpush1.msra.mxu0 0.0
    %463 = vmatprep.subr.mxu0 0.0
    %464 = vmatpush1.msra.mxu0 0.0
    %465 = vmatprep.subr.mxu0 0.0
    %466 = vmatpush1.msra.mxu0 0.0
    %467 = vmatprep.subr.mxu0 0.0
    %468 = vmatpush1.msra.mxu0 0.0
    %469 = vmatprep.subr.mxu0 0.0
    %470 = vmatpush1.msra.mxu0 0.0
    %471 = vmatprep.mubr.f32.mxu0 0.0
    %472 = vmatmul.mubr.f32.gmra.mrb[0].mxu0 %v312
    %v473 = vpop.f32.mrb[0].mxu0
    %v474 = vadd.f32 0.0, %v473
    %v475 = vpop.f32.mrb[0].mxu0
    %v476 = vadd.f32 0.0, %v475
    %477 = vmatprep.mubr.f32.mxu0 0.0
    %478 = vmatmul.mubr.f32.gmra.mrb[0].mxu0 %v315
    %v479 = vpop.f32.mrb[0].mxu0
    %v480 = vadd.f32 0.0, %v479
    %v481 = vpop.f32.mrb[0].mxu0
    %v482 = vadd.f32 0.0, %v481
    %483 = vmatprep.mubr.f32.mxu0 0.0
    %484 = vmatmul.mubr.f32.gmra.mrb[0].mxu0 %v318
    %v485 = vpop.f32.mrb[0].mxu0
    %v486 = vadd.f32 0.0, %v485
    %v487 = vpop.f32.mrb[0].mxu0
    %v488 = vadd.f32 0.0, %v487
    %489 = vmatprep.mubr.f32.mxu0 0.0
    %490 = vmatmul.mubr.f32.gmra.mrb[0].mxu0 %v321
    %v491 = vpop.f32.mrb[0].mxu0
    %v492 = vadd.f32 0.0, %v491
    %v493 = vpop.f32.mrb[0].mxu0
    %v494 = vadd.f32 0.0, %v493
    %495 = vmatprep.mubr.f32.mxu0 0.0
    %496 = vmatmul.mubr.f32.gmra.mrb[0].mxu0 %v324
    %v497 = vpop.f32.mrb[0].mxu0
    %v498 = vadd.f32 0.0, %v497
    %v499 = vpop.f32.mrb[0].mxu0
    %v500 = vadd.f32 0.0, %v499
    %501 = vmatprep.mubr.f32.mxu0 0.0
    %502 = vmatmul.mubr.f32.gmra.mrb[0].mxu0 %v327
    %v503 = vpop.f32.mrb[0].mxu0
    %v504 = vadd.f32 0.0, %v503
    %v505 = vpop.f32.mrb[0].mxu0
    %v506 = vadd.f32 0.0, %v505
    %507 = vmatprep.mubr.f32.mxu0 0.0
    %508 = vmatmul.mubr.f32.gmra.mrb[0].mxu0 %v330
    %v509 = vpop.f32.mrb[0].mxu0
    %v510 = vadd.f32 0.0, %v509
    %v511 = vpop.f32.mrb[0].mxu0
    %v512 = vadd.f32 0.0, %v511
    %513 = vmatprep.mubr.f32.mxu0 0.0
    %514 = vmatmul.mubr.f32.gmra.mrb[0].mxu0 %v333
    %v515 = vpop.f32.mrb[0].mxu0
    %v516 = vadd.f32 0.0, %v515
    %v517 = vpop.f32.mrb[0].mxu0
    %v518 = vadd.f32 0.0, %v517
    %519 = vmatprep.mubr.f32.mxu0 0.0
    %520 = vmatmul.mubr.f32.gmra.mrb[0].mxu0 %v336
    %v521 = vpop.f32.mrb[0].mxu0
    %v522 = vadd.f32 0.0, %v521
    %v523 = vpop.f32.mrb[0].mxu0
    %v524 = vadd.f32 0.0, %v523
    %525 = vmatprep.mubr.f32.mxu0 0.0
    %526 = vmatmul.mubr.f32.gmra.mrb[0].mxu0 %v339
    %v527 = vpop.f32.mrb[0].mxu0
    %v528 = vadd.f32 0.0, %v527
    %v529 = vpop.f32.mrb[0].mxu0
    %v530 = vadd.f32 0.0, %v529
    %531 = vmatprep.mubr.f32.mxu0 0.0
    %532 = vmatmul.mubr.f32.gmra.mrb[0].mxu0 %v342
    %v533 = vpop.f32.mrb[0].mxu0
    %v534 = vadd.f32 0.0, %v533
    %v535 = vpop.f32.mrb[0].mxu0
    %v536 = vadd.f32 0.0, %v535
    %537 = vmatprep.mubr.f32.mxu0 0.0
    %538 = vmatmul.mubr.f32.gmra.mrb[0].mxu0 %v345
    %v539 = vpop.f32.mrb[0].mxu0
    %v540 = vadd.f32 0.0, %v539
    %v541 = vpop.f32.mrb[0].mxu0
    %v542 = vadd.f32 0.0, %v541
    %543 = vmatprep.mubr.f32.mxu0 0.0
    %544 = vmatmul.mubr.f32.gmra.mrb[0].mxu0 %v348
    %v545 = vpop.f32.mrb[0].mxu0
    %v546 = vadd.f32 0.0, %v545
    %v547 = vpop.f32.mrb[0].mxu0
    %v548 = vadd.f32 0.0, %v547
    %549 = vmatprep.mubr.f32.mxu0 0.0
    %550 = vmatmul.mubr.f32.gmra.mrb[0].mxu0 %v351
    %v551 = vpop.f32.mrb[0].mxu0
    %v552 = vadd.f32 0.0, %v551
    %v553 = vpop.f32.mrb[0].mxu0
    %v554 = vadd.f32 0.0, %v553
    %555 = vmatprep.mubr.f32.mxu0 0.0
    %556 = vmatmul.mubr.f32.gmra.mrb[0].mxu0 %v354
    %v557 = vpop.f32.mrb[0].mxu0
    %v558 = vadd.f32 0.0, %v557
    %v559 = vpop.f32.mrb[0].mxu0
    %v560 = vadd.f32 0.0, %v559
    %561 = vmatprep.mubr.f32.mxu0 0.0
    %562 = vmatmul.mubr.f32.gmra.mrb[0].mxu0 %v357
    %v563 = vpop.f32.mrb[0].mxu0
    %v564 = vadd.f32 0.0, %v563
    %v565 = vpop.f32.mrb[0].mxu0
    %v566 = vadd.f32 0.0, %v565
    %567 = vmatprep.mubr.f32.mxu0 0.0
    %568 = vmatmul.mubr.f32.gmra.mrb[0].mxu0 %v360
    %v569 = vpop.f32.mrb[0].mxu0
    %v570 = vadd.f32 0.0, %v569
    %v571 = vpop.f32.mrb[0].mxu0
    %v572 = vadd.f32 0.0, %v571
    %573 = vmatprep.mubr.f32.mxu0 0.0
    %574 = vmatmul.mubr.f32.gmra.mrb[0].mxu0 %v363
    %v575 = vpop.f32.mrb[0].mxu0
    %v576 = vadd.f32 0.0, %v575
    %v577 = vpop.f32.mrb[0].mxu0
    %v578 = vadd.f32 0.0, %v577
    %579 = vmatprep.mubr.f32.mxu0 0.0
    %580 = vmatmul.mubr.f32.gmra.mrb[0].mxu0 %v366
    %v581 = vpop.f32.mrb[0].mxu0
    %v582 = vadd.f32 0.0, %v581
    %v583 = vpop.f32.mrb[0].mxu0
    %v584 = vadd.f32 0.0, %v583
    %585 = vmatprep.mubr.f32.mxu0 0.0
    %586 = vmatmul.mubr.f32.gmra.mrb[0].mxu0 %v369
    %v587 = vpop.f32.mrb[0].mxu0
    %v588 = vadd.f32 0.0, %v587
    %v589 = vpop.f32.mrb[0].mxu0
    %v590 = vadd.f32 0.0, %v589
    %591 = vmatprep.mubr.f32.mxu0 0.0
    %592 = vmatmul.mubr.f32.gmra.mrb[0].mxu0 %v372
    %v593 = vpop.f32.mrb[0].mxu0
    %v594 = vadd.f32 0.0, %v593
    %v595 = vpop.f32.mrb[0].mxu0
    %v596 = vadd.f32 0.0, %v595
    %597 = vmatprep.mubr.f32.mxu0 0.0
    %598 = vmatmul.mubr.f32.gmra.mrb[0].mxu0 %v375
    %v599 = vpop.f32.mrb[0].mxu0
    %v600 = vadd.f32 0.0, %v599
    %v601 = vpop.f32.mrb[0].mxu0
    %v602 = vadd.f32 0.0, %v601
    %603 = vmatprep.mubr.f32.mxu0 0.0
    %604 = vmatmul.mubr.f32.gmra.mrb[0].mxu0 %v378
    %v605 = vpop.f32.mrb[0].mxu0
    %v606 = vadd.f32 0.0, %v605
    %v607 = vpop.f32.mrb[0].mxu0
    %v608 = vadd.f32 0.0, %v607
    %609 = vmatprep.mubr.f32.mxu0 0.0
    %610 = vmatmul.mubr.f32.gmra.mrb[0].mxu0 %v381
    %v611 = vpop.f32.mrb[0].mxu0
    %v612 = vadd.f32 0.0, %v611
    %v613 = vpop.f32.mrb[0].mxu0
    %v614 = vadd.f32 0.0, %v613
    %615 = vmatprep.mubr.f32.mxu0 0.0
    %616 = vmatmul.mubr.f32.gmra.mrb[0].mxu0 %v384
    %v617 = vpop.f32.mrb[0].mxu0
    %v618 = vadd.f32 0.0, %v617
    %v619 = vpop.f32.mrb[0].mxu0
    %v620 = vadd.f32 0.0, %v619
    %621 = vmatprep.mubr.f32.mxu0 0.0
    %622 = vmatmul.mubr.f32.gmra.mrb[0].mxu0 %v387
    %v623 = vpop.f32.mrb[0].mxu0
    %v624 = vadd.f32 0.0, %v623
    %v625 = vpop.f32.mrb[0].mxu0
    %v626 = vadd.f32 0.0, %v625
    %627 = vmatprep.mubr.f32.mxu0 0.0
    %628 = vmatmul.mubr.f32.gmra.mrb[0].mxu0 %v390
    %v629 = vpop.f32.mrb[0].mxu0
    %v630 = vadd.f32 0.0, %v629
    %v631 = vpop.f32.mrb[0].mxu0
    %v632 = vadd.f32 0.0, %v631
    %633 = vmatprep.mubr.f32.mxu0 0.0
    %634 = vmatmul.mubr.f32.gmra.mrb[0].mxu0 %v393
    %v635 = vpop.f32.mrb[0].mxu0
    %v636 = vadd.f32 0.0, %v635
    %v637 = vpop.f32.mrb[0].mxu0
    %v638 = vadd.f32 0.0, %v637
    %639 = vmatprep.mubr.f32.mxu0 0.0
    %640 = vmatmul.mubr.f32.gmra.mrb[0].mxu0 %v396
    %v641 = vpop.f32.mrb[0].mxu0
    %v642 = vadd.f32 0.0, %v641
    %v643 = vpop.f32.mrb[0].mxu0
    %v644 = vadd.f32 0.0, %v643
    %645 = vmatprep.mubr.f32.mxu0 0.0
    %646 = vmatmul.mubr.f32.gmra.mrb[0].mxu0 %v399
    %v647 = vpop.f32.mrb[0].mxu0
    %v648 = vadd.f32 0.0, %v647
    %v649 = vpop.f32.mrb[0].mxu0
    %v650 = vadd.f32 0.0, %v649
    %651 = vmatprep.mubr.f32.mxu0 0.0
    %652 = vmatmul.mubr.f32.gmra.mrb[0].mxu0 %v402
    %v653 = vpop.f32.mrb[0].mxu0
    %v654 = vadd.f32 0.0, %v653
    %v655 = vpop.f32.mrb[0].mxu0
    %v656 = vadd.f32 0.0, %v655
    %657 = vmatprep.mubr.f32.mxu0 0.0
    %658 = vmatmul.mubr.f32.gmra.mrb[0].mxu0 %v405
    %v659 = vpop.f32.mrb[0].mxu0
    %v660 = vadd.f32 0.0, %v659
    %v661 = vpop.f32.mrb[0].mxu0
    %v662 = vadd.f32 0.0, %v661
    %663 = vdwg.mxu0
    %v664 = vmax.f32 %v474, %v486
    %v665 = vmax.f32 %v480, %v492
    %v666 = vmax.f32 %v664, %v498
    %v667 = vmax.f32 %v665, %v504
    %v668 = vmax.f32 %v666, %v510
    %v669 = vmax.f32 %v667, %v516
    %v670 = vmax.f32 %v668, %v522
    %v671 = vmax.f32 %v669, %v528
    %v672 = vmax.f32 %v670, %v534
    %v673 = vmax.f32 %v671, %v540
    %v674 = vmax.f32 %v672, %v546
    %v675 = vmax.f32 %v673, %v552
    %v676 = vmax.f32 %v674, %v558
    %v677 = vmax.f32 %v675, %v564
    %v678 = vmax.f32 %v676, %v570
    %v679 = vmax.f32 %v677, %v576
    %v680 = vmax.f32 %v678, %v582
    %v681 = vmax.f32 %v679, %v588
    %v682 = vmax.f32 %v680, %v594
    %v683 = vmax.f32 %v681, %v600
    %v684 = vmax.f32 %v682, %v606
    %v685 = vmax.f32 %v683, %v612
    %v686 = vmax.f32 %v684, %v618
    %v687 = vmax.f32 %v685, %v624
    %v688 = vmax.f32 %v686, %v630
    %v689 = vmax.f32 %v687, %v636
    %v690 = vmax.f32 %v688, %v642
    %v691 = vmax.f32 %v689, %v648
    %v692 = vmax.f32 %v690, %v654
    %v693 = vmax.f32 %v691, %v660
    %v694 = vmax.f32 %v692, %v693
    %v695 = vrot.slane %v694, 4
    %v696 = vmax.f32 %v694, %v695
    %v697 = vrot.slane %v696, 2
    %v698 = vmax.f32 %v696, %v697
    %v699 = vrot.slane %v698, 1
    %v700 = vmax.f32 %v698, %v699
    %v701 = vmax.f32 %v476, %v488
    %v702 = vmax.f32 %v482, %v494
    %v703 = vmax.f32 %v701, %v500
    %v704 = vmax.f32 %v702, %v506
    %v705 = vmax.f32 %v703, %v512
    %v706 = vmax.f32 %v704, %v518
    %v707 = vmax.f32 %v705, %v524
    %v708 = vmax.f32 %v706, %v530
    %v709 = vmax.f32 %v707, %v536
    %v710 = vmax.f32 %v708, %v542
    %v711 = vmax.f32 %v709, %v548
    %v712 = vmax.f32 %v710, %v554
    %v713 = vmax.f32 %v711, %v560
    %v714 = vmax.f32 %v712, %v566
    %v715 = vmax.f32 %v713, %v572
    %v716 = vmax.f32 %v714, %v578
    %v717 = vmax.f32 %v715, %v584
    %v718 = vmax.f32 %v716, %v590
    %v719 = vmax.f32 %v717, %v596
    %v720 = vmax.f32 %v718, %v602
    %v721 = vmax.f32 %v719, %v608
    %v722 = vmax.f32 %v720, %v614
    %v723 = vmax.f32 %v721, %v620
    %v724 = vmax.f32 %v722, %v626
    %v725 = vmax.f32 %v723, %v632
    %v726 = vmax.f32 %v724, %v638
    %v727 = vmax.f32 %v725, %v644
    %v728 = vmax.f32 %v726, %v650
    %v729 = vmax.f32 %v727, %v656
    %v730 = vmax.f32 %v728, %v662
    %v731 = vmax.f32 %v729, %v730
    %v732 = vrot.slane %v731, 4
    %v733 = vmax.f32 %v731, %v732
    %v734 = vrot.slane %v733, 2
    %v735 = vmax.f32 %v733, %v734
    %v736 = vrot.slane %v735, 1
    %v737 = vmax.f32 %v735, %v736
    %v738 = vsub.f32 %v474, %v700
    %v739 = vsub.f32 %v476, %v737
    %v740 = vsub.f32 %v480, %v700
    %v741 = vsub.f32 %v482, %v737
    %v742 = vsub.f32 %v486, %v700
    %v743 = vsub.f32 %v488, %v737
    %v744 = vsub.f32 %v492, %v700
    %v745 = vsub.f32 %v494, %v737
    %v746 = vsub.f32 %v498, %v700
    %v747 = vsub.f32 %v500, %v737
    %v748 = vsub.f32 %v504, %v700
    %v749 = vsub.f32 %v506, %v737
    %v750 = vsub.f32 %v510, %v700
    %v751 = vsub.f32 %v512, %v737
    %v752 = vsub.f32 %v516, %v700
    %v753 = vsub.f32 %v518, %v737
    %v754 = vsub.f32 %v522, %v700
    %v755 = vsub.f32 %v524, %v737
    %v756 = vsub.f32 %v528, %v700
    %v757 = vsub.f32 %v530, %v737
    %v758 = vsub.f32 %v534, %v700
    %v759 = vsub.f32 %v536, %v737
    %v760 = vsub.f32 %v540, %v700
    %v761 = vsub.f32 %v542, %v737
    %v762 = vsub.f32 %v546, %v700
    %v763 = vsub.f32 %v548, %v737
    %v764 = vsub.f32 %v552, %v700
    %v765 = vsub.f32 %v554, %v737
    %v766 = vsub.f32 %v558, %v700
    %v767 = vsub.f32 %v560, %v737
    %v768 = vsub.f32 %v564, %v700
    %v769 = vsub.f32 %v566, %v737
    %v770 = vsub.f32 %v570, %v700
    %v771 = vsub.f32 %v572, %v737
    %v772 = vsub.f32 %v576, %v700
    %v773 = vsub.f32 %v578, %v737
    %v774 = vsub.f32 %v582, %v700
    %v775 = vsub.f32 %v584, %v737
    %v776 = vsub.f32 %v588, %v700
    %v777 = vsub.f32 %v590, %v737
    %v778 = vsub.f32 %v594, %v700
    %v779 = vsub.f32 %v596, %v737
    %v780 = vsub.f32 %v600, %v700
    %v781 = vsub.f32 %v602, %v737
    %v782 = vsub.f32 %v606, %v700
    %v783 = vsub.f32 %v608, %v737
    %v784 = vsub.f32 %v612, %v700
    %v785 = vsub.f32 %v614, %v737
    %v786 = vsub.f32 %v618, %v700
    %v787 = vsub.f32 %v620, %v737
    %v788 = vsub.f32 %v624, %v700
    %v789 = vsub.f32 %v626, %v737
    %v790 = vsub.f32 %v630, %v700
    %v791 = vsub.f32 %v632, %v737
    %v792 = vsub.f32 %v636, %v700
    %v793 = vsub.f32 %v638, %v737
    %v794 = vsub.f32 %v642, %v700
    %v795 = vsub.f32 %v644, %v737
    %v796 = vsub.f32 %v648, %v700
    %v797 = vsub.f32 %v650, %v737
    %v798 = vsub.f32 %v654, %v700
    %v799 = vsub.f32 %v656, %v737
    %v800 = vsub.f32 %v660, %v700
    %v801 = vsub.f32 %v662, %v737
    %v802 = vmul.f32 %v738, 1.442695
    %v803 = vpow.pop %v802
    %v804 = vmul.f32 %v739, 1.442695
    %v805 = vpow.pop %v804
    %v806 = vmul.f32 %v740, 1.442695
    %v807 = vpow.pop %v806
    %v808 = vmul.f32 %v741, 1.442695
    %v809 = vpow.pop %v808
    %v810 = vmul.f32 %v742, 1.442695
    %v811 = vpow.pop %v810
    %v812 = vmul.f32 %v743, 1.442695
    %v813 = vpow.pop %v812
    %v814 = vmul.f32 %v744, 1.442695
    %v815 = vpow.pop %v814
    %v816 = vmul.f32 %v745, 1.442695
    %v817 = vpow.pop %v816
    %v818 = vmul.f32 %v746, 1.442695
    %v819 = vpow.pop %v818
    %v820 = vmul.f32 %v747, 1.442695
    %v821 = vpow.pop %v820
    %v822 = vmul.f32 %v748, 1.442695
    %v823 = vpow.pop %v822
    %v824 = vmul.f32 %v749, 1.442695
    %v825 = vpow.pop %v824
    %v826 = vmul.f32 %v750, 1.442695
    %v827 = vpow.pop %v826
    %v828 = vmul.f32 %v751, 1.442695
    %v829 = vpow.pop %v828
    %v830 = vmul.f32 %v752, 1.442695
    %v831 = vpow.pop %v830
    %v832 = vmul.f32 %v753, 1.442695
    %v833 = vpow.pop %v832
    %v834 = vmul.f32 %v754, 1.442695
    %v835 = vpow.pop %v834
    %v836 = vmul.f32 %v755, 1.442695
    %v837 = vpow.pop %v836
    %v838 = vmul.f32 %v756, 1.442695
    %v839 = vpow.pop %v838
    %v840 = vmul.f32 %v757, 1.442695
    %v841 = vpow.pop %v840
    %v842 = vmul.f32 %v758, 1.442695
    %v843 = vpow.pop %v842
    %v844 = vmul.f32 %v759, 1.442695
    %v845 = vpow.pop %v844
    %v846 = vmul.f32 %v760, 1.442695
    %v847 = vpow.pop %v846
    %v848 = vmul.f32 %v761, 1.442695
    %v849 = vpow.pop %v848
    %v850 = vmul.f32 %v762, 1.442695
    %v851 = vpow.pop %v850
    %v852 = vmul.f32 %v763, 1.442695
    %v853 = vpow.pop %v852
    %v854 = vmul.f32 %v764, 1.442695
    %v855 = vpow.pop %v854
    %v856 = vmul.f32 %v765, 1.442695
    %v857 = vpow.pop %v856
    %v858 = vmul.f32 %v766, 1.442695
    %v859 = vpow.pop %v858
    %v860 = vmul.f32 %v767, 1.442695
    %v861 = vpow.pop %v860
    %v862 = vmul.f32 %v768, 1.442695
    %v863 = vpow.pop %v862
    %v864 = vmul.f32 %v769, 1.442695
    %v865 = vpow.pop %v864
    %v866 = vmul.f32 %v770, 1.442695
    %v867 = vpow.pop %v866
    %v868 = vmul.f32 %v771, 1.442695
    %v869 = vpow.pop %v868
    %v870 = vmul.f32 %v772, 1.442695
    %v871 = vpow.pop %v870
    %v872 = vmul.f32 %v773, 1.442695
    %v873 = vpow.pop %v872
    %v874 = vmul.f32 %v774, 1.442695
    %v875 = vpow.pop %v874
    %v876 = vmul.f32 %v775, 1.442695
    %v877 = vpow.pop %v876
    %v878 = vmul.f32 %v776, 1.442695
    %v879 = vpow.pop %v878
    %v880 = vmul.f32 %v777, 1.442695
    %v881 = vpow.pop %v880
    %v882 = vmul.f32 %v778, 1.442695
    %v883 = vpow.pop %v882
    %v884 = vmul.f32 %v779, 1.442695
    %v885 = vpow.pop %v884
    %v886 = vmul.f32 %v780, 1.442695
    %v887 = vpow.pop %v886
    %v888 = vmul.f32 %v781, 1.442695
    %v889 = vpow.pop %v888
    %v890 = vmul.f32 %v782, 1.442695
    %v891 = vpow.pop %v890
    %v892 = vmul.f32 %v783, 1.442695
    %v893 = vpow.pop %v892
    %v894 = vmul.f32 %v784, 1.442695
    %v895 = vpow.pop %v894
    %v896 = vmul.f32 %v785, 1.442695
    %v897 = vpow.pop %v896
    %v898 = vmul.f32 %v786, 1.442695
    %v899 = vpow.pop %v898
    %v900 = vmul.f32 %v787, 1.442695
    %v901 = vpow.pop %v900
    %v902 = vmul.f32 %v788, 1.442695
    %v903 = vpow.pop %v902
    %v904 = vmul.f32 %v789, 1.442695
    %v905 = vpow.pop %v904
    %v906 = vmul.f32 %v790, 1.442695
    %v907 = vpow.pop %v906
    %v908 = vmul.f32 %v791, 1.442695
    %v909 = vpow.pop %v908
    %v910 = vmul.f32 %v792, 1.442695
    %v911 = vpow.pop %v910
    %v912 = vmul.f32 %v793, 1.442695
    %v913 = vpow.pop %v912
    %v914 = vmul.f32 %v794, 1.442695
    %v915 = vpow.pop %v914
    %v916 = vmul.f32 %v795, 1.442695
    %v917 = vpow.pop %v916
    %v918 = vmul.f32 %v796, 1.442695
    %v919 = vpow.pop %v918
    %v920 = vmul.f32 %v797, 1.442695
    %v921 = vpow.pop %v920
    %v922 = vmul.f32 %v798, 1.442695
    %v923 = vpow.pop %v922
    %v924 = vmul.f32 %v799, 1.442695
    %v925 = vpow.pop %v924
    %v926 = vmul.f32 %v800, 1.442695
    %v927 = vpow.pop %v926
    %v928 = vmul.f32 %v801, 1.442695
    %v929 = vpow.pop %v928
    %v930 = vadd.f32 %v803, %v807
    %v931 = vadd.f32 %v930, %v811
    %v932 = vadd.f32 %v931, %v815
    %v933 = vadd.f32 %v932, %v819
    %v934 = vadd.f32 %v933, %v823
    %v935 = vadd.f32 %v934, %v827
    %v936 = vadd.f32 %v935, %v831
    %v937 = vadd.f32 %v936, %v835
    %v938 = vadd.f32 %v937, %v839
    %v939 = vadd.f32 %v938, %v843
    %v940 = vadd.f32 %v939, %v847
    %v941 = vadd.f32 %v940, %v851
    %v942 = vadd.f32 %v941, %v855
    %v943 = vadd.f32 %v942, %v859
    %v944 = vadd.f32 %v943, %v863
    %v945 = vadd.f32 %v944, %v867
    %v946 = vadd.f32 %v945, %v871
    %v947 = vadd.f32 %v946, %v875
    %v948 = vadd.f32 %v947, %v879
    %v949 = vadd.f32 %v948, %v883
    %v950 = vadd.f32 %v949, %v887
    %v951 = vadd.f32 %v950, %v891
    %v952 = vadd.f32 %v951, %v895
    %v953 = vadd.f32 %v952, %v899
    %v954 = vadd.f32 %v953, %v903
    %v955 = vadd.f32 %v954, %v907
    %v956 = vadd.f32 %v955, %v911
    %v957 = vadd.f32 %v956, %v915
    %v958 = vadd.f32 %v957, %v919
    %v959 = vadd.f32 %v958, %v923
    %v960 = vadd.f32 %v959, %v927
    %v961 = vrot.slane %v960, 4
    %v962 = vadd.f32 %v960, %v961
    %v963 = vrot.slane %v962, 2
    %v964 = vadd.f32 %v962, %v963
    %v965 = vrot.slane %v964, 1
    %v966 = vadd.f32 %v964, %v965
    %v967 = vadd.f32 %v805, %v809
    %v968 = vadd.f32 %v967, %v813
    %v969 = vadd.f32 %v968, %v817
    %v970 = vadd.f32 %v969, %v821
    %v971 = vadd.f32 %v970, %v825
    %v972 = vadd.f32 %v971, %v829
    %v973 = vadd.f32 %v972, %v833
    %v974 = vadd.f32 %v973, %v837
    %v975 = vadd.f32 %v974, %v841
    %v976 = vadd.f32 %v975, %v845
    %v977 = vadd.f32 %v976, %v849
    %v978 = vadd.f32 %v977, %v853
    %v979 = vadd.f32 %v978, %v857
    %v980 = vadd.f32 %v979, %v861
    %v981 = vadd.f32 %v980, %v865
    %v982 = vadd.f32 %v981, %v869
    %v983 = vadd.f32 %v982, %v873
    %v984 = vadd.f32 %v983, %v877
    %v985 = vadd.f32 %v984, %v881
    %v986 = vadd.f32 %v985, %v885
    %v987 = vadd.f32 %v986, %v889
    %v988 = vadd.f32 %v987, %v893
    %v989 = vadd.f32 %v988, %v897
    %v990 = vadd.f32 %v989, %v901
    %v991 = vadd.f32 %v990, %v905
    %v992 = vadd.f32 %v991, %v909
    %v993 = vadd.f32 %v992, %v913
    %v994 = vadd.f32 %v993, %v917
    %v995 = vadd.f32 %v994, %v921
    %v996 = vadd.f32 %v995, %v925
    %v997 = vadd.f32 %v996, %v929
    %v998 = vrot.slane %v997, 4
    %v999 = vadd.f32 %v997, %v998
    %v1000 = vrot.slane %v999, 2
    %v1001 = vadd.f32 %v999, %v1000
    %v1002 = vrot.slane %v1001, 1
    %v1003 = vadd.f32 %v1001, %v1002
    %1004 = vmatprep.subr.mxu0 %v805
    %1005 = vmatpush1.msra.mxu0 %v803
    %1006 = vmatprep.subr.mxu0 %v809
    %1007 = vmatpush1.msra.mxu0 %v807
    %1008 = vmatprep.subr.mxu0 %v813
    %1009 = vmatpush1.msra.mxu0 %v811
    %1010 = vmatprep.subr.mxu0 %v817
    %1011 = vmatpush1.msra.mxu0 %v815
    %1012 = vmatprep.subr.mxu0 %v821
    %1013 = vmatpush1.msra.mxu0 %v819
    %1014 = vmatprep.subr.mxu0 %v825
    %1015 = vmatpush1.msra.mxu0 %v823
    %1016 = vmatprep.subr.mxu0 %v829
    %1017 = vmatpush1.msra.mxu0 %v827
    %1018 = vmatprep.subr.mxu0 %v833
    %1019 = vmatpush1.msra.mxu0 %v831
    %1020 = vmatprep.subr.mxu0 %v837
    %1021 = vmatpush1.msra.mxu0 %v835
    %1022 = vmatprep.subr.mxu0 %v841
    %1023 = vmatpush1.msra.mxu0 %v839
    %1024 = vmatprep.subr.mxu0 %v845
    %1025 = vmatpush1.msra.mxu0 %v843
    %1026 = vmatprep.subr.mxu0 %v849
    %1027 = vmatpush1.msra.mxu0 %v847
    %1028 = vmatprep.subr.mxu0 %v853
    %1029 = vmatpush1.msra.mxu0 %v851
    %1030 = vmatprep.subr.mxu0 %v857
    %1031 = vmatpush1.msra.mxu0 %v855
    %1032 = vmatprep.subr.mxu0 %v861
    %1033 = vmatpush1.msra.mxu0 %v859
    %1034 = vmatprep.subr.mxu0 %v865
    %1035 = vmatpush1.msra.mxu0 %v863
    %1036 = vmatprep.subr.mxu0 %v869
    %1037 = vmatpush1.msra.mxu0 %v867
    %1038 = vmatprep.subr.mxu0 %v873
    %1039 = vmatpush1.msra.mxu0 %v871
    %1040 = vmatprep.subr.mxu0 %v877
    %1041 = vmatpush1.msra.mxu0 %v875
    %1042 = vmatprep.subr.mxu0 %v881
    %1043 = vmatpush1.msra.mxu0 %v879
    %1044 = vmatprep.subr.mxu0 %v885
    %1045 = vmatpush1.msra.mxu0 %v883
    %1046 = vmatprep.subr.mxu0 %v889
    %1047 = vmatpush1.msra.mxu0 %v887
    %1048 = vmatprep.subr.mxu0 %v893
    %1049 = vmatpush1.msra.mxu0 %v891
    %1050 = vmatprep.subr.mxu0 %v897
    %1051 = vmatpush1.msra.mxu0 %v895
    %1052 = vmatprep.subr.mxu0 %v901
    %1053 = vmatpush1.msra.mxu0 %v899
    %1054 = vmatprep.subr.mxu0 %v905
    %1055 = vmatpush1.msra.mxu0 %v903
    %1056 = vmatprep.subr.mxu0 %v909
    %1057 = vmatpush1.msra.mxu0 %v907
    %1058 = vmatprep.subr.mxu0 %v913
    %1059 = vmatpush1.msra.mxu0 %v911
    %1060 = vmatprep.subr.mxu0 %v917
    %1061 = vmatpush1.msra.mxu0 %v915
    %1062 = vmatprep.subr.mxu0 %v921
    %1063 = vmatpush1.msra.mxu0 %v919
    %1064 = vmatprep.subr.mxu0 %v925
    %1065 = vmatpush1.msra.mxu0 %v923
    %1066 = vmatprep.subr.mxu0 %v929
    %1067 = vmatpush1.msra.mxu0 %v927
    %1068 = vmatprep.mubr.f32.mxu0 %v157
    %1069 = vmatmul.mubr.f32.gmra.mrb[0].mxu0 %v155
    %v1070 = vpop.f32.mrb[0].mxu0
    %v1071 = vadd.f32 0.0, %v1070
    %v1072 = vpop.f32.mrb[0].mxu0
    %v1073 = vadd.f32 0.0, %v1072
    %1074 = vmatprep.mubr.f32.mxu0 %v163
    %1075 = vmatmul.mubr.f32.gmra.mrb[0].mxu0 %v161
    %v1076 = vpop.f32.mrb[0].mxu0
    %v1077 = vadd.f32 0.0, %v1076
    %v1078 = vpop.f32.mrb[0].mxu0
    %v1079 = vadd.f32 0.0, %v1078
    %1080 = vdwg.mxu0
    %v1081 = vrcp.pop %v966
    %v1082 = vrcp.pop %v1003
    %v1083 = vmul.f32 %v1071, %v1081
    %v1084 = vmul.f32 %v1073, %v1082
    %v1085 = vmul.f32 %v1077, %v1081
    %v1086 = vmul.f32 %v1079, %v1082
    %v1087 = vstv %s42
    %v1088 = vmul.f32 %v1087, %v1083
    %v1089 = vmul.f32 %v1087, %v1084
    %v1090 = vmul.f32 %v1087, %v1085
    %v1091 = vmul.f32 %v1087, %v1086
    %v1092 = vadd.f32 %v1088, %v47
    %v1093 = vadd.f32 %v1089, %v48
    %v1094 = vadd.f32 %v1090, %v49
    %v1095 = vadd.f32 %v1091, %v50
    %1096 = vst [vmem:[#allocation6] sm:$0xff] %v1092
    %1097 = vst [vmem:[#allocation6 + $0x8] sm:$0xff] %v1093
    %1098 = vst [vmem:[#allocation6 + $0x10] sm:$0xff] %v1094
    %1099 = vst [vmem:[#allocation6 + $0x18] sm:$0xff] %v1095
    %s1100 = scalar_lea.vmem [#allocation3], 32
    %v1101 = vld [vmem:[%s1100] sm:$0xff]
    %v1102 = vld [vmem:[%s1100 + $0x8] sm:$0xff]
    %v1103 = vld [vmem:[%s1100 + $0x10] sm:$0xff]
    %v1104 = vld [vmem:[%s1100 + $0x18] sm:$0xff]
    %s1105 = scalar_lea.vmem %s0, 32
    %v1106 = vld [vmem:[%s1105] sm:$0xff]
    %v1107 = vld [vmem:[%s1105 + $0x8] sm:$0xff]
    %v1108 = vld [vmem:[%s1105 + $0x10] sm:$0xff]
    %v1109 = vld [vmem:[%s1105 + $0x18] sm:$0xff]
    %v1110 = vld [vmem:[%s4] sm:$0xff]
    %v1111 = vld [vmem:[%s4 + $0x8] sm:$0xff]
    %v1112 = vld [vmem:[%s4 + $0x10] sm:$0xff]
    %v1113 = vld [vmem:[%s5] sm:$0xff]
    %v1114 = vld [vmem:[%s5 + $0x8] sm:$0xff]
    %v1115 = vld [vmem:[%s5 + $0x10] sm:$0xff]
    %1117 = vset.pattern.permute.xlu0 0
    %1118 = vperm.xlu0 %1117, %v1113
    %v1119 = vpop.permute.xlu0 %1118
    %1122 = vset.pattern.permute.xlu0 0
    %1123 = vperm.xlu0 %1122, %v1114
    %v1124 = vpop.permute.xlu0 %1123
    %1127 = vset.pattern.permute.xlu0 0
    %1128 = vperm.xlu0 %1127, %v1115
    %v1129 = vpop.permute.xlu0 %1128
    %v1132 = vsel %vm72, %v1110, 0
    %v1135 = vsel %vm72, %v1111, 0
    %v1138 = vsel %vm72, %v1112, 0
    %1140 = vmatprep.subr.mxu0 %v1102
    %1141 = vmatpush1.msra.mxu0 %v1101
    %1142 = vmatprep.subr.mxu0 %v1104
    %1143 = vmatpush1.msra.mxu0 %v1103
    %1144 = vmatprep.subr.mxu0 0.0
    %1145 = vmatpush1.msra.mxu0 0.0
    %1146 = vmatprep.subr.mxu0 0.0
    %1147 = vmatpush1.msra.mxu0 0.0
    %1148 = vmatprep.subr.mxu0 0.0
    %1149 = vmatpush1.msra.mxu0 0.0
    %1150 = vmatprep.subr.mxu0 0.0
    %1151 = vmatpush1.msra.mxu0 0.0
    %1152 = vmatprep.subr.mxu0 0.0
    %1153 = vmatpush1.msra.mxu0 0.0
    %1154 = vmatprep.subr.mxu0 0.0
    %1155 = vmatpush1.msra.mxu0 0.0
    %1156 = vmatprep.subr.mxu0 0.0
    %1157 = vmatpush1.msra.mxu0 0.0
    %1158 = vmatprep.subr.mxu0 0.0
    %1159 = vmatpush1.msra.mxu0 0.0
    %1160 = vmatprep.subr.mxu0 0.0
    %1161 = vmatpush1.msra.mxu0 0.0
    %1162 = vmatprep.subr.mxu0 0.0
    %1163 = vmatpush1.msra.mxu0 0.0
    %1164 = vmatprep.subr.mxu0 0.0
    %1165 = vmatpush1.msra.mxu0 0.0
    %1166 = vmatprep.subr.mxu0 0.0
    %1167 = vmatpush1.msra.mxu0 0.0
    %1168 = vmatprep.subr.mxu0 0.0
    %1169 = vmatpush1.msra.mxu0 0.0
    %1170 = vmatprep.subr.mxu0 0.0
    %1171 = vmatpush1.msra.mxu0 0.0
    %1172 = vmatprep.subr.mxu0 0.0
    %1173 = vmatpush1.msra.mxu0 0.0
    %1174 = vmatprep.subr.mxu0 0.0
    %1175 = vmatpush1.msra.mxu0 0.0
    %1176 = vmatprep.subr.mxu0 0.0
    %1177 = vmatpush1.msra.mxu0 0.0
    %1178 = vmatprep.subr.mxu0 0.0
    %1179 = vmatpush1.msra.mxu0 0.0
    %1180 = vmatprep.subr.mxu0 0.0
    %1181 = vmatpush1.msra.mxu0 0.0
    %1182 = vmatprep.subr.mxu0 0.0
    %1183 = vmatpush1.msra.mxu0 0.0
    %1184 = vmatprep.subr.mxu0 0.0
    %1185 = vmatpush1.msra.mxu0 0.0
    %1186 = vmatprep.subr.mxu0 0.0
    %1187 = vmatpush1.msra.mxu0 0.0
    %1188 = vmatprep.subr.mxu0 0.0
    %1189 = vmatpush1.msra.mxu0 0.0
    %1190 = vmatprep.subr.mxu0 0.0
    %1191 = vmatpush1.msra.mxu0 0.0
    %1192 = vmatprep.subr.mxu0 0.0
    %1193 = vmatpush1.msra.mxu0 0.0
    %1194 = vmatprep.subr.mxu0 0.0
    %1195 = vmatpush1.msra.mxu0 0.0
    %1196 = vmatprep.subr.mxu0 0.0
    %1197 = vmatpush1.msra.mxu0 0.0
    %1198 = vmatprep.subr.mxu0 0.0
    %1199 = vmatpush1.msra.mxu0 0.0
    %1200 = vmatprep.subr.mxu0 0.0
    %1201 = vmatpush1.msra.mxu0 0.0
    %1202 = vmatprep.subr.mxu0 0.0
    %1203 = vmatpush1.msra.mxu0 0.0
    %1204 = vmatprep.mubr.f32.mxu0 0.0
    %1205 = vmatmul.mubr.f32.gmra.mrb[0].mxu0 %v1132
    %v1206 = vpop.f32.mrb[0].mxu0
    %v1207 = vadd.f32 %v1119, %v1206
    %v1208 = vpop.f32.mrb[0].mxu0
    %v1209 = vadd.f32 %v1119, %v1208
    %1210 = vmatprep.mubr.f32.mxu0 0.0
    %1211 = vmatmul.mubr.f32.gmra.mrb[0].mxu0 %v1135
    %v1212 = vpop.f32.mrb[0].mxu0
    %v1213 = vadd.f32 %v1124, %v1212
    %v1214 = vpop.f32.mrb[0].mxu0
    %v1215 = vadd.f32 %v1124, %v1214
    %1216 = vmatprep.mubr.f32.mxu0 0.0
    %1217 = vmatmul.mubr.f32.gmra.mrb[0].mxu0 %v1138
    %v1218 = vpop.f32.mrb[0].mxu0
    %v1219 = vadd.f32 %v1129, %v1218
    %v1220 = vpop.f32.mrb[0].mxu0
    %v1221 = vadd.f32 %v1129, %v1220
    %1222 = vdwg.mxu0
    %v1223 = vld [vmem:[%s2] sm:$0xff]
    %v1224 = vld [vmem:[%s3] sm:$0xff]
    %1226 = vset.pattern.permute.xlu0 0
    %1227 = vperm.xlu0 %1226, %v1224
    %v1228 = vpop.permute.xlu0 %1227
    %v1231 = vsel %vm72, %v1223, 0
    %1233 = vmatprep.subr.mxu0 %v1107
    %1234 = vmatpush1.msra.mxu0 %v1106
    %1235 = vmatprep.subr.mxu0 %v1109
    %1236 = vmatpush1.msra.mxu0 %v1108
    %1237 = vmatprep.subr.mxu0 0.0
    %1238 = vmatpush1.msra.mxu0 0.0
    %1239 = vmatprep.subr.mxu0 0.0
    %1240 = vmatpush1.msra.mxu0 0.0
    %1241 = vmatprep.subr.mxu0 0.0
    %1242 = vmatpush1.msra.mxu0 0.0
    %1243 = vmatprep.subr.mxu0 0.0
    %1244 = vmatpush1.msra.mxu0 0.0
    %1245 = vmatprep.subr.mxu0 0.0
    %1246 = vmatpush1.msra.mxu0 0.0
    %1247 = vmatprep.subr.mxu0 0.0
    %1248 = vmatpush1.msra.mxu0 0.0
    %1249 = vmatprep.subr.mxu0 0.0
    %1250 = vmatpush1.msra.mxu0 0.0
    %1251 = vmatprep.subr.mxu0 0.0
    %1252 = vmatpush1.msra.mxu0 0.0
    %1253 = vmatprep.subr.mxu0 0.0
    %1254 = vmatpush1.msra.mxu0 0.0
    %1255 = vmatprep.subr.mxu0 0.0
    %1256 = vmatpush1.msra.mxu0 0.0
    %1257 = vmatprep.subr.mxu0 0.0
    %1258 = vmatpush1.msra.mxu0 0.0
    %1259 = vmatprep.subr.mxu0 0.0
    %1260 = vmatpush1.msra.mxu0 0.0
    %1261 = vmatprep.subr.mxu0 0.0
    %1262 = vmatpush1.msra.mxu0 0.0
    %1263 = vmatprep.subr.mxu0 0.0
    %1264 = vmatpush1.msra.mxu0 0.0
    %1265 = vmatprep.subr.mxu0 0.0
    %1266 = vmatpush1.msra.mxu0 0.0
    %1267 = vmatprep.subr.mxu0 0.0
    %1268 = vmatpush1.msra.mxu0 0.0
    %1269 = vmatprep.subr.mxu0 0.0
    %1270 = vmatpush1.msra.mxu0 0.0
    %1271 = vmatprep.subr.mxu0 0.0
    %1272 = vmatpush1.msra.mxu0 0.0
    %1273 = vmatprep.subr.mxu0 0.0
    %1274 = vmatpush1.msra.mxu0 0.0
    %1275 = vmatprep.subr.mxu0 0.0
    %1276 = vmatpush1.msra.mxu0 0.0
    %1277 = vmatprep.subr.mxu0 0.0
    %1278 = vmatpush1.msra.mxu0 0.0
    %1279 = vmatprep.subr.mxu0 0.0
    %1280 = vmatpush1.msra.mxu0 0.0
    %1281 = vmatprep.subr.mxu0 0.0
    %1282 = vmatpush1.msra.mxu0 0.0
    %1283 = vmatprep.subr.mxu0 0.0
    %1284 = vmatpush1.msra.mxu0 0.0
    %1285 = vmatprep.subr.mxu0 0.0
    %1286 = vmatpush1.msra.mxu0 0.0
    %1287 = vmatprep.subr.mxu0 0.0
    %1288 = vmatpush1.msra.mxu0 0.0
    %1289 = vmatprep.subr.mxu0 0.0
    %1290 = vmatpush1.msra.mxu0 0.0
    %1291 = vmatprep.subr.mxu0 0.0
    %1292 = vmatpush1.msra.mxu0 0.0
    %1293 = vmatprep.subr.mxu0 0.0
    %1294 = vmatpush1.msra.mxu0 0.0
    %1295 = vmatprep.subr.mxu0 0.0
    %1296 = vmatpush1.msra.mxu0 0.0
    %1297 = vmatprep.mubr.f32.mxu0 0.0
    %1298 = vmatmul.mubr.f32.gmra.mrb[0].mxu0 %v1231
    %v1299 = vpop.f32.mrb[0].mxu0
    %v1300 = vadd.f32 %v1228, %v1299
    %v1301 = vpop.f32.mrb[0].mxu0
    %v1302 = vadd.f32 %v1228, %v1301
    %1303 = vdwg.mxu0
    %1304 = vxpose.xlu0.b32.start [1/16] %v1207, 128
    %1305 = vxpose.xlu0.b32.cont [2/16] 0.0, 128
    %1306 = vxpose.xlu0.b32.cont [3/16] 0.0, 128
    %1307 = vxpose.xlu0.b32.cont [4/16] 0.0, 128
    %1308 = vxpose.xlu0.b32.cont [5/16] 0.0, 128
    %1309 = vxpose.xlu0.b32.cont [6/16] 0.0, 128
    %1310 = vxpose.xlu0.b32.cont [7/16] 0.0, 128
    %1311 = vxpose.xlu0.b32.cont [8/16] 0.0, 128
    %1312 = vxpose.xlu0.b32.cont [9/16] 0.0, 128
    %1313 = vxpose.xlu0.b32.cont [10/16] 0.0, 128
    %1314 = vxpose.xlu0.b32.cont [11/16] 0.0, 128
    %1315 = vxpose.xlu0.b32.cont [12/16] 0.0, 128
    %1316 = vxpose.xlu0.b32.cont [13/16] 0.0, 128
    %1317 = vxpose.xlu0.b32.cont [14/16] 0.0, 128
    %1318 = vxpose.xlu0.b32.cont [15/16] 0.0, 128
    %1319 = vxpose.xlu0.b32.end [16/16] 0.0, 128
    %v1320 = vpop.trf.xlu0
    %v1321 = vpop.trf.xlu0
    %v1322 = vpop.trf.xlu0
    %v1323 = vpop.trf.xlu0
    %v1324 = vpop.trf.xlu0
    %v1325 = vpop.trf.xlu0
    %v1326 = vpop.trf.xlu0
    %v1327 = vpop.trf.xlu0
    %v1328 = vpop.trf.xlu0
    %v1329 = vpop.trf.xlu0
    %v1330 = vpop.trf.xlu0
    %v1331 = vpop.trf.xlu0
    %v1332 = vpop.trf.xlu0
    %v1333 = vpop.trf.xlu0
    %v1334 = vpop.trf.xlu0
    %v1335 = vpop.trf.xlu0
    %1336 = vxpose.xlu0.b32.start [1/16] %v1209, 128
    %1337 = vxpose.xlu0.b32.cont [2/16] 0.0, 128
    %1338 = vxpose.xlu0.b32.cont [3/16] 0.0, 128
    %1339 = vxpose.xlu0.b32.cont [4/16] 0.0, 128
    %1340 = vxpose.xlu0.b32.cont [5/16] 0.0, 128
    %1341 = vxpose.xlu0.b32.cont [6/16] 0.0, 128
    %1342 = vxpose.xlu0.b32.cont [7/16] 0.0, 128
    %1343 = vxpose.xlu0.b32.cont [8/16] 0.0, 128
    %1344 = vxpose.xlu0.b32.cont [9/16] 0.0, 128
    %1345 = vxpose.xlu0.b32.cont [10/16] 0.0, 128
    %1346 = vxpose.xlu0.b32.cont [11/16] 0.0, 128
    %1347 = vxpose.xlu0.b32.cont [12/16] 0.0, 128
    %1348 = vxpose.xlu0.b32.cont [13/16] 0.0, 128
    %1349 = vxpose.xlu0.b32.cont [14/16] 0.0, 128
    %1350 = vxpose.xlu0.b32.cont [15/16] 0.0, 128
    %1351 = vxpose.xlu0.b32.end [16/16] 0.0, 128
    %v1352 = vpop.trf.xlu0
    %v1353 = vpop.trf.xlu0
    %v1354 = vpop.trf.xlu0
    %v1355 = vpop.trf.xlu0
    %v1356 = vpop.trf.xlu0
    %v1357 = vpop.trf.xlu0
    %v1358 = vpop.trf.xlu0
    %v1359 = vpop.trf.xlu0
    %v1360 = vpop.trf.xlu0
    %v1361 = vpop.trf.xlu0
    %v1362 = vpop.trf.xlu0
    %v1363 = vpop.trf.xlu0
    %v1364 = vpop.trf.xlu0
    %v1365 = vpop.trf.xlu0
    %v1366 = vpop.trf.xlu0
    %v1367 = vpop.trf.xlu0
    %v1369 = vsel %vm310, %v1320, 0
    %v1372 = vsel %vm310, %v1321, 0
    %v1375 = vsel %vm310, %v1322, 0
    %v1378 = vsel %vm310, %v1323, 0
    %v1381 = vsel %vm310, %v1324, 0
    %v1384 = vsel %vm310, %v1325, 0
    %v1387 = vsel %vm310, %v1326, 0
    %v1390 = vsel %vm310, %v1327, 0
    %v1393 = vsel %vm310, %v1328, 0
    %v1396 = vsel %vm310, %v1329, 0
    %v1399 = vsel %vm310, %v1330, 0
    %v1402 = vsel %vm310, %v1331, 0
    %v1405 = vsel %vm310, %v1332, 0
    %v1408 = vsel %vm310, %v1333, 0
    %v1411 = vsel %vm310, %v1334, 0
    %v1414 = vsel %vm310, %v1335, 0
    %v1417 = vsel %vm310, %v1352, 0
    %v1420 = vsel %vm310, %v1353, 0
    %v1423 = vsel %vm310, %v1354, 0
    %v1426 = vsel %vm310, %v1355, 0
    %v1429 = vsel %vm310, %v1356, 0
    %v1432 = vsel %vm310, %v1357, 0
    %v1435 = vsel %vm310, %v1358, 0
    %v1438 = vsel %vm310, %v1359, 0
    %v1441 = vsel %vm310, %v1360, 0
    %v1444 = vsel %vm310, %v1361, 0
    %v1447 = vsel %vm310, %v1362, 0
    %v1450 = vsel %vm310, %v1363, 0
    %v1453 = vsel %vm310, %v1364, 0
    %v1456 = vsel %vm310, %v1365, 0
    %v1459 = vsel %vm310, %v1366, 0
    %v1462 = vsel %vm310, %v1367, 0
    %1464 = vmatprep.subr.mxu0 %v1302
    %1465 = vmatpush1.msra.mxu0 %v1300
    %1466 = vmatprep.subr.mxu0 0.0
    %1467 = vmatpush1.msra.mxu0 0.0
    %1468 = vmatprep.subr.mxu0 0.0
    %1469 = vmatpush1.msra.mxu0 0.0
    %1470 = vmatprep.subr.mxu0 0.0
    %1471 = vmatpush1.msra.mxu0 0.0
    %1472 = vmatprep.subr.mxu0 0.0
    %1473 = vmatpush1.msra.mxu0 0.0
    %1474 = vmatprep.subr.mxu0 0.0
    %1475 = vmatpush1.msra.mxu0 0.0
    %1476 = vmatprep.subr.mxu0 0.0
    %1477 = vmatpush1.msra.mxu0 0.0
    %1478 = vmatprep.subr.mxu0 0.0
    %1479 = vmatpush1.msra.mxu0 0.0
    %1480 = vmatprep.subr.mxu0 0.0
    %1481 = vmatpush1.msra.mxu0 0.0
    %1482 = vmatprep.subr.mxu0 0.0
    %1483 = vmatpush1.msra.mxu0 0.0
    %1484 = vmatprep.subr.mxu0 0.0
    %1485 = vmatpush1.msra.mxu0 0.0
    %1486 = vmatprep.subr.mxu0 0.0
    %1487 = vmatpush1.msra.mxu0 0.0
    %1488 = vmatprep.subr.mxu0 0.0
    %1489 = vmatpush1.msra.mxu0 0.0
    %1490 = vmatprep.subr.mxu0 0.0
    %1491 = vmatpush1.msra.mxu0 0.0
    %1492 = vmatprep.subr.mxu0 0.0
    %1493 = vmatpush1.msra.mxu0 0.0
    %1494 = vmatprep.subr.mxu0 0.0
    %1495 = vmatpush1.msra.mxu0 0.0
    %1496 = vmatprep.subr.mxu0 0.0
    %1497 = vmatpush1.msra.mxu0 0.0
    %1498 = vmatprep.subr.mxu0 0.0
    %1499 = vmatpush1.msra.mxu0 0.0
    %1500 = vmatprep.subr.mxu0 0.0
    %1501 = vmatpush1.msra.mxu0 0.0
    %1502 = vmatprep.subr.mxu0 0.0
    %1503 = vmatpush1.msra.mxu0 0.0
    %1504 = vmatprep.subr.mxu0 0.0
    %1505 = vmatpush1.msra.mxu0 0.0
    %1506 = vmatprep.subr.mxu0 0.0
    %1507 = vmatpush1.msra.mxu0 0.0
    %1508 = vmatprep.subr.mxu0 0.0
    %1509 = vmatpush1.msra.mxu0 0.0
    %1510 = vmatprep.subr.mxu0 0.0
    %1511 = vmatpush1.msra.mxu0 0.0
    %1512 = vmatprep.subr.mxu0 0.0
    %1513 = vmatpush1.msra.mxu0 0.0
    %1514 = vmatprep.subr.mxu0 0.0
    %1515 = vmatpush1.msra.mxu0 0.0
    %1516 = vmatprep.subr.mxu0 0.0
    %1517 = vmatpush1.msra.mxu0 0.0
    %1518 = vmatprep.subr.mxu0 0.0
    %1519 = vmatpush1.msra.mxu0 0.0
    %1520 = vmatprep.subr.mxu0 0.0
    %1521 = vmatpush1.msra.mxu0 0.0
    %1522 = vmatprep.subr.mxu0 0.0
    %1523 = vmatpush1.msra.mxu0 0.0
    %1524 = vmatprep.subr.mxu0 0.0
    %1525 = vmatpush1.msra.mxu0 0.0
    %1526 = vmatprep.subr.mxu0 0.0
    %1527 = vmatpush1.msra.mxu0 0.0
    %1528 = vmatprep.mubr.f32.mxu0 0.0
    %1529 = vmatmul.mubr.f32.gmra.mrb[0].mxu0 %v1369
    %v1530 = vpop.f32.mrb[0].mxu0
    %v1531 = vadd.f32 0.0, %v1530
    %v1532 = vpop.f32.mrb[0].mxu0
    %v1533 = vadd.f32 0.0, %v1532
    %1534 = vmatprep.mubr.f32.mxu0 0.0
    %1535 = vmatmul.mubr.f32.gmra.mrb[0].mxu0 %v1372
    %v1536 = vpop.f32.mrb[0].mxu0
    %v1537 = vadd.f32 0.0, %v1536
    %v1538 = vpop.f32.mrb[0].mxu0
    %v1539 = vadd.f32 0.0, %v1538
    %1540 = vmatprep.mubr.f32.mxu0 0.0
    %1541 = vmatmul.mubr.f32.gmra.mrb[0].mxu0 %v1375
    %v1542 = vpop.f32.mrb[0].mxu0
    %v1543 = vadd.f32 0.0, %v1542
    %v1544 = vpop.f32.mrb[0].mxu0
    %v1545 = vadd.f32 0.0, %v1544
    %1546 = vmatprep.mubr.f32.mxu0 0.0
    %1547 = vmatmul.mubr.f32.gmra.mrb[0].mxu0 %v1378
    %v1548 = vpop.f32.mrb[0].mxu0
    %v1549 = vadd.f32 0.0, %v1548
    %v1550 = vpop.f32.mrb[0].mxu0
    %v1551 = vadd.f32 0.0, %v1550
    %1552 = vmatprep.mubr.f32.mxu0 0.0
    %1553 = vmatmul.mubr.f32.gmra.mrb[0].mxu0 %v1381
    %v1554 = vpop.f32.mrb[0].mxu0
    %v1555 = vadd.f32 0.0, %v1554
    %v1556 = vpop.f32.mrb[0].mxu0
    %v1557 = vadd.f32 0.0, %v1556
    %1558 = vmatprep.mubr.f32.mxu0 0.0
    %1559 = vmatmul.mubr.f32.gmra.mrb[0].mxu0 %v1384
    %v1560 = vpop.f32.mrb[0].mxu0
    %v1561 = vadd.f32 0.0, %v1560
    %v1562 = vpop.f32.mrb[0].mxu0
    %v1563 = vadd.f32 0.0, %v1562
    %1564 = vmatprep.mubr.f32.mxu0 0.0
    %1565 = vmatmul.mubr.f32.gmra.mrb[0].mxu0 %v1387
    %v1566 = vpop.f32.mrb[0].mxu0
    %v1567 = vadd.f32 0.0, %v1566
    %v1568 = vpop.f32.mrb[0].mxu0
    %v1569 = vadd.f32 0.0, %v1568
    %1570 = vmatprep.mubr.f32.mxu0 0.0
    %1571 = vmatmul.mubr.f32.gmra.mrb[0].mxu0 %v1390
    %v1572 = vpop.f32.mrb[0].mxu0
    %v1573 = vadd.f32 0.0, %v1572
    %v1574 = vpop.f32.mrb[0].mxu0
    %v1575 = vadd.f32 0.0, %v1574
    %1576 = vmatprep.mubr.f32.mxu0 0.0
    %1577 = vmatmul.mubr.f32.gmra.mrb[0].mxu0 %v1393
    %v1578 = vpop.f32.mrb[0].mxu0
    %v1579 = vadd.f32 0.0, %v1578
    %v1580 = vpop.f32.mrb[0].mxu0
    %v1581 = vadd.f32 0.0, %v1580
    %1582 = vmatprep.mubr.f32.mxu0 0.0
    %1583 = vmatmul.mubr.f32.gmra.mrb[0].mxu0 %v1396
    %v1584 = vpop.f32.mrb[0].mxu0
    %v1585 = vadd.f32 0.0, %v1584
    %v1586 = vpop.f32.mrb[0].mxu0
    %v1587 = vadd.f32 0.0, %v1586
    %1588 = vmatprep.mubr.f32.mxu0 0.0
    %1589 = vmatmul.mubr.f32.gmra.mrb[0].mxu0 %v1399
    %v1590 = vpop.f32.mrb[0].mxu0
    %v1591 = vadd.f32 0.0, %v1590
    %v1592 = vpop.f32.mrb[0].mxu0
    %v1593 = vadd.f32 0.0, %v1592
    %1594 = vmatprep.mubr.f32.mxu0 0.0
    %1595 = vmatmul.mubr.f32.gmra.mrb[0].mxu0 %v1402
    %v1596 = vpop.f32.mrb[0].mxu0
    %v1597 = vadd.f32 0.0, %v1596
    %v1598 = vpop.f32.mrb[0].mxu0
    %v1599 = vadd.f32 0.0, %v1598
    %1600 = vmatprep.mubr.f32.mxu0 0.0
    %1601 = vmatmul.mubr.f32.gmra.mrb[0].mxu0 %v1405
    %v1602 = vpop.f32.mrb[0].mxu0
    %v1603 = vadd.f32 0.0, %v1602
    %v1604 = vpop.f32.mrb[0].mxu0
    %v1605 = vadd.f32 0.0, %v1604
    %1606 = vmatprep.mubr.f32.mxu0 0.0
    %1607 = vmatmul.mubr.f32.gmra.mrb[0].mxu0 %v1408
    %v1608 = vpop.f32.mrb[0].mxu0
    %v1609 = vadd.f32 0.0, %v1608
    %v1610 = vpop.f32.mrb[0].mxu0
    %v1611 = vadd.f32 0.0, %v1610
    %1612 = vmatprep.mubr.f32.mxu0 0.0
    %1613 = vmatmul.mubr.f32.gmra.mrb[0].mxu0 %v1411
    %v1614 = vpop.f32.mrb[0].mxu0
    %v1615 = vadd.f32 0.0, %v1614
    %v1616 = vpop.f32.mrb[0].mxu0
    %v1617 = vadd.f32 0.0, %v1616
    %1618 = vmatprep.mubr.f32.mxu0 0.0
    %1619 = vmatmul.mubr.f32.gmra.mrb[0].mxu0 %v1414
    %v1620 = vpop.f32.mrb[0].mxu0
    %v1621 = vadd.f32 0.0, %v1620
    %v1622 = vpop.f32.mrb[0].mxu0
    %v1623 = vadd.f32 0.0, %v1622
    %1624 = vmatprep.mubr.f32.mxu0 0.0
    %1625 = vmatmul.mubr.f32.gmra.mrb[0].mxu0 %v1417
    %v1626 = vpop.f32.mrb[0].mxu0
    %v1627 = vadd.f32 0.0, %v1626
    %v1628 = vpop.f32.mrb[0].mxu0
    %v1629 = vadd.f32 0.0, %v1628
    %1630 = vmatprep.mubr.f32.mxu0 0.0
    %1631 = vmatmul.mubr.f32.gmra.mrb[0].mxu0 %v1420
    %v1632 = vpop.f32.mrb[0].mxu0
    %v1633 = vadd.f32 0.0, %v1632
    %v1634 = vpop.f32.mrb[0].mxu0
    %v1635 = vadd.f32 0.0, %v1634
    %1636 = vmatprep.mubr.f32.mxu0 0.0
    %1637 = vmatmul.mubr.f32.gmra.mrb[0].mxu0 %v1423
    %v1638 = vpop.f32.mrb[0].mxu0
    %v1639 = vadd.f32 0.0, %v1638
    %v1640 = vpop.f32.mrb[0].mxu0
    %v1641 = vadd.f32 0.0, %v1640
    %1642 = vmatprep.mubr.f32.mxu0 0.0
    %1643 = vmatmul.mubr.f32.gmra.mrb[0].mxu0 %v1426
    %v1644 = vpop.f32.mrb[0].mxu0
    %v1645 = vadd.f32 0.0, %v1644
    %v1646 = vpop.f32.mrb[0].mxu0
    %v1647 = vadd.f32 0.0, %v1646
    %1648 = vmatprep.mubr.f32.mxu0 0.0
    %1649 = vmatmul.mubr.f32.gmra.mrb[0].mxu0 %v1429
    %v1650 = vpop.f32.mrb[0].mxu0
    %v1651 = vadd.f32 0.0, %v1650
    %v1652 = vpop.f32.mrb[0].mxu0
    %v1653 = vadd.f32 0.0, %v1652
    %1654 = vmatprep.mubr.f32.mxu0 0.0
    %1655 = vmatmul.mubr.f32.gmra.mrb[0].mxu0 %v1432
    %v1656 = vpop.f32.mrb[0].mxu0
    %v1657 = vadd.f32 0.0, %v1656
    %v1658 = vpop.f32.mrb[0].mxu0
    %v1659 = vadd.f32 0.0, %v1658
    %1660 = vmatprep.mubr.f32.mxu0 0.0
    %1661 = vmatmul.mubr.f32.gmra.mrb[0].mxu0 %v1435
    %v1662 = vpop.f32.mrb[0].mxu0
    %v1663 = vadd.f32 0.0, %v1662
    %v1664 = vpop.f32.mrb[0].mxu0
    %v1665 = vadd.f32 0.0, %v1664
    %1666 = vmatprep.mubr.f32.mxu0 0.0
    %1667 = vmatmul.mubr.f32.gmra.mrb[0].mxu0 %v1438
    %v1668 = vpop.f32.mrb[0].mxu0
    %v1669 = vadd.f32 0.0, %v1668
    %v1670 = vpop.f32.mrb[0].mxu0
    %v1671 = vadd.f32 0.0, %v1670
    %1672 = vmatprep.mubr.f32.mxu0 0.0
    %1673 = vmatmul.mubr.f32.gmra.mrb[0].mxu0 %v1441
    %v1674 = vpop.f32.mrb[0].mxu0
    %v1675 = vadd.f32 0.0, %v1674
    %v1676 = vpop.f32.mrb[0].mxu0
    %v1677 = vadd.f32 0.0, %v1676
    %1678 = vmatprep.mubr.f32.mxu0 0.0
    %1679 = vmatmul.mubr.f32.gmra.mrb[0].mxu0 %v1444
    %v1680 = vpop.f32.mrb[0].mxu0
    %v1681 = vadd.f32 0.0, %v1680
    %v1682 = vpop.f32.mrb[0].mxu0
    %v1683 = vadd.f32 0.0, %v1682
    %1684 = vmatprep.mubr.f32.mxu0 0.0
    %1685 = vmatmul.mubr.f32.gmra.mrb[0].mxu0 %v1447
    %v1686 = vpop.f32.mrb[0].mxu0
    %v1687 = vadd.f32 0.0, %v1686
    %v1688 = vpop.f32.mrb[0].mxu0
    %v1689 = vadd.f32 0.0, %v1688
    %1690 = vmatprep.mubr.f32.mxu0 0.0
    %1691 = vmatmul.mubr.f32.gmra.mrb[0].mxu0 %v1450
    %v1692 = vpop.f32.mrb[0].mxu0
    %v1693 = vadd.f32 0.0, %v1692
    %v1694 = vpop.f32.mrb[0].mxu0
    %v1695 = vadd.f32 0.0, %v1694
    %1696 = vmatprep.mubr.f32.mxu0 0.0
    %1697 = vmatmul.mubr.f32.gmra.mrb[0].mxu0 %v1453
    %v1698 = vpop.f32.mrb[0].mxu0
    %v1699 = vadd.f32 0.0, %v1698
    %v1700 = vpop.f32.mrb[0].mxu0
    %v1701 = vadd.f32 0.0, %v1700
    %1702 = vmatprep.mubr.f32.mxu0 0.0
    %1703 = vmatmul.mubr.f32.gmra.mrb[0].mxu0 %v1456
    %v1704 = vpop.f32.mrb[0].mxu0
    %v1705 = vadd.f32 0.0, %v1704
    %v1706 = vpop.f32.mrb[0].mxu0
    %v1707 = vadd.f32 0.0, %v1706
    %1708 = vmatprep.mubr.f32.mxu0 0.0
    %1709 = vmatmul.mubr.f32.gmra.mrb[0].mxu0 %v1459
    %v1710 = vpop.f32.mrb[0].mxu0
    %v1711 = vadd.f32 0.0, %v1710
    %v1712 = vpop.f32.mrb[0].mxu0
    %v1713 = vadd.f32 0.0, %v1712
    %1714 = vmatprep.mubr.f32.mxu0 0.0
    %1715 = vmatmul.mubr.f32.gmra.mrb[0].mxu0 %v1462
    %v1716 = vpop.f32.mrb[0].mxu0
    %v1717 = vadd.f32 0.0, %v1716
    %v1718 = vpop.f32.mrb[0].mxu0
    %v1719 = vadd.f32 0.0, %v1718
    %1720 = vdwg.mxu0
    %v1721 = vmax.f32 %v1531, %v1543
    %v1722 = vmax.f32 %v1537, %v1549
    %v1723 = vmax.f32 %v1721, %v1555
    %v1724 = vmax.f32 %v1722, %v1561
    %v1725 = vmax.f32 %v1723, %v1567
    %v1726 = vmax.f32 %v1724, %v1573
    %v1727 = vmax.f32 %v1725, %v1579
    %v1728 = vmax.f32 %v1726, %v1585
    %v1729 = vmax.f32 %v1727, %v1591
    %v1730 = vmax.f32 %v1728, %v1597
    %v1731 = vmax.f32 %v1729, %v1603
    %v1732 = vmax.f32 %v1730, %v1609
    %v1733 = vmax.f32 %v1731, %v1615
    %v1734 = vmax.f32 %v1732, %v1621
    %v1735 = vmax.f32 %v1733, %v1627
    %v1736 = vmax.f32 %v1734, %v1633
    %v1737 = vmax.f32 %v1735, %v1639
    %v1738 = vmax.f32 %v1736, %v1645
    %v1739 = vmax.f32 %v1737, %v1651
    %v1740 = vmax.f32 %v1738, %v1657
    %v1741 = vmax.f32 %v1739, %v1663
    %v1742 = vmax.f32 %v1740, %v1669
    %v1743 = vmax.f32 %v1741, %v1675
    %v1744 = vmax.f32 %v1742, %v1681
    %v1745 = vmax.f32 %v1743, %v1687
    %v1746 = vmax.f32 %v1744, %v1693
    %v1747 = vmax.f32 %v1745, %v1699
    %v1748 = vmax.f32 %v1746, %v1705
    %v1749 = vmax.f32 %v1747, %v1711
    %v1750 = vmax.f32 %v1748, %v1717
    %v1751 = vmax.f32 %v1749, %v1750
    %v1752 = vrot.slane %v1751, 4
    %v1753 = vmax.f32 %v1751, %v1752
    %v1754 = vrot.slane %v1753, 2
    %v1755 = vmax.f32 %v1753, %v1754
    %v1756 = vrot.slane %v1755, 1
    %v1757 = vmax.f32 %v1755, %v1756
    %v1758 = vmax.f32 %v1533, %v1545
    %v1759 = vmax.f32 %v1539, %v1551
    %v1760 = vmax.f32 %v1758, %v1557
    %v1761 = vmax.f32 %v1759, %v1563
    %v1762 = vmax.f32 %v1760, %v1569
    %v1763 = vmax.f32 %v1761, %v1575
    %v1764 = vmax.f32 %v1762, %v1581
    %v1765 = vmax.f32 %v1763, %v1587
    %v1766 = vmax.f32 %v1764, %v1593
    %v1767 = vmax.f32 %v1765, %v1599
    %v1768 = vmax.f32 %v1766, %v1605
    %v1769 = vmax.f32 %v1767, %v1611
    %v1770 = vmax.f32 %v1768, %v1617
    %v1771 = vmax.f32 %v1769, %v1623
    %v1772 = vmax.f32 %v1770, %v1629
    %v1773 = vmax.f32 %v1771, %v1635
    %v1774 = vmax.f32 %v1772, %v1641
    %v1775 = vmax.f32 %v1773, %v1647
    %v1776 = vmax.f32 %v1774, %v1653
    %v1777 = vmax.f32 %v1775, %v1659
    %v1778 = vmax.f32 %v1776, %v1665
    %v1779 = vmax.f32 %v1777, %v1671
    %v1780 = vmax.f32 %v1778, %v1677
    %v1781 = vmax.f32 %v1779, %v1683
    %v1782 = vmax.f32 %v1780, %v1689
    %v1783 = vmax.f32 %v1781, %v1695
    %v1784 = vmax.f32 %v1782, %v1701
    %v1785 = vmax.f32 %v1783, %v1707
    %v1786 = vmax.f32 %v1784, %v1713
    %v1787 = vmax.f32 %v1785, %v1719
    %v1788 = vmax.f32 %v1786, %v1787
    %v1789 = vrot.slane %v1788, 4
    %v1790 = vmax.f32 %v1788, %v1789
    %v1791 = vrot.slane %v1790, 2
    %v1792 = vmax.f32 %v1790, %v1791
    %v1793 = vrot.slane %v1792, 1
    %v1794 = vmax.f32 %v1792, %v1793
    %v1795 = vsub.f32 %v1531, %v1757
    %v1796 = vsub.f32 %v1533, %v1794
    %v1797 = vsub.f32 %v1537, %v1757
    %v1798 = vsub.f32 %v1539, %v1794
    %v1799 = vsub.f32 %v1543, %v1757
    %v1800 = vsub.f32 %v1545, %v1794
    %v1801 = vsub.f32 %v1549, %v1757
    %v1802 = vsub.f32 %v1551, %v1794
    %v1803 = vsub.f32 %v1555, %v1757
    %v1804 = vsub.f32 %v1557, %v1794
    %v1805 = vsub.f32 %v1561, %v1757
    %v1806 = vsub.f32 %v1563, %v1794
    %v1807 = vsub.f32 %v1567, %v1757
    %v1808 = vsub.f32 %v1569, %v1794
    %v1809 = vsub.f32 %v1573, %v1757
    %v1810 = vsub.f32 %v1575, %v1794
    %v1811 = vsub.f32 %v1579, %v1757
    %v1812 = vsub.f32 %v1581, %v1794
    %v1813 = vsub.f32 %v1585, %v1757
    %v1814 = vsub.f32 %v1587, %v1794
    %v1815 = vsub.f32 %v1591, %v1757
    %v1816 = vsub.f32 %v1593, %v1794
    %v1817 = vsub.f32 %v1597, %v1757
    %v1818 = vsub.f32 %v1599, %v1794
    %v1819 = vsub.f32 %v1603, %v1757
    %v1820 = vsub.f32 %v1605, %v1794
    %v1821 = vsub.f32 %v1609, %v1757
    %v1822 = vsub.f32 %v1611, %v1794
    %v1823 = vsub.f32 %v1615, %v1757
    %v1824 = vsub.f32 %v1617, %v1794
    %v1825 = vsub.f32 %v1621, %v1757
    %v1826 = vsub.f32 %v1623, %v1794
    %v1827 = vsub.f32 %v1627, %v1757
    %v1828 = vsub.f32 %v1629, %v1794
    %v1829 = vsub.f32 %v1633, %v1757
    %v1830 = vsub.f32 %v1635, %v1794
    %v1831 = vsub.f32 %v1639, %v1757
    %v1832 = vsub.f32 %v1641, %v1794
    %v1833 = vsub.f32 %v1645, %v1757
    %v1834 = vsub.f32 %v1647, %v1794
    %v1835 = vsub.f32 %v1651, %v1757
    %v1836 = vsub.f32 %v1653, %v1794
    %v1837 = vsub.f32 %v1657, %v1757
    %v1838 = vsub.f32 %v1659, %v1794
    %v1839 = vsub.f32 %v1663, %v1757
    %v1840 = vsub.f32 %v1665, %v1794
    %v1841 = vsub.f32 %v1669, %v1757
    %v1842 = vsub.f32 %v1671, %v1794
    %v1843 = vsub.f32 %v1675, %v1757
    %v1844 = vsub.f32 %v1677, %v1794
    %v1845 = vsub.f32 %v1681, %v1757
    %v1846 = vsub.f32 %v1683, %v1794
    %v1847 = vsub.f32 %v1687, %v1757
    %v1848 = vsub.f32 %v1689, %v1794
    %v1849 = vsub.f32 %v1693, %v1757
    %v1850 = vsub.f32 %v1695, %v1794
    %v1851 = vsub.f32 %v1699, %v1757
    %v1852 = vsub.f32 %v1701, %v1794
    %v1853 = vsub.f32 %v1705, %v1757
    %v1854 = vsub.f32 %v1707, %v1794
    %v1855 = vsub.f32 %v1711, %v1757
    %v1856 = vsub.f32 %v1713, %v1794
    %v1857 = vsub.f32 %v1717, %v1757
    %v1858 = vsub.f32 %v1719, %v1794
    %v1859 = vmul.f32 %v1795, 1.442695
    %v1860 = vpow.pop %v1859
    %v1861 = vmul.f32 %v1796, 1.442695
    %v1862 = vpow.pop %v1861
    %v1863 = vmul.f32 %v1797, 1.442695
    %v1864 = vpow.pop %v1863
    %v1865 = vmul.f32 %v1798, 1.442695
    %v1866 = vpow.pop %v1865
    %v1867 = vmul.f32 %v1799, 1.442695
    %v1868 = vpow.pop %v1867
    %v1869 = vmul.f32 %v1800, 1.442695
    %v1870 = vpow.pop %v1869
    %v1871 = vmul.f32 %v1801, 1.442695
    %v1872 = vpow.pop %v1871
    %v1873 = vmul.f32 %v1802, 1.442695
    %v1874 = vpow.pop %v1873
    %v1875 = vmul.f32 %v1803, 1.442695
    %v1876 = vpow.pop %v1875
    %v1877 = vmul.f32 %v1804, 1.442695
    %v1878 = vpow.pop %v1877
    %v1879 = vmul.f32 %v1805, 1.442695
    %v1880 = vpow.pop %v1879
    %v1881 = vmul.f32 %v1806, 1.442695
    %v1882 = vpow.pop %v1881
    %v1883 = vmul.f32 %v1807, 1.442695
    %v1884 = vpow.pop %v1883
    %v1885 = vmul.f32 %v1808, 1.442695
    %v1886 = vpow.pop %v1885
    %v1887 = vmul.f32 %v1809, 1.442695
    %v1888 = vpow.pop %v1887
    %v1889 = vmul.f32 %v1810, 1.442695
    %v1890 = vpow.pop %v1889
    %v1891 = vmul.f32 %v1811, 1.442695
    %v1892 = vpow.pop %v1891
    %v1893 = vmul.f32 %v1812, 1.442695
    %v1894 = vpow.pop %v1893
    %v1895 = vmul.f32 %v1813, 1.442695
    %v1896 = vpow.pop %v1895
    %v1897 = vmul.f32 %v1814, 1.442695
    %v1898 = vpow.pop %v1897
    %v1899 = vmul.f32 %v1815, 1.442695
    %v1900 = vpow.pop %v1899
    %v1901 = vmul.f32 %v1816, 1.442695
    %v1902 = vpow.pop %v1901
    %v1903 = vmul.f32 %v1817, 1.442695
    %v1904 = vpow.pop %v1903
    %v1905 = vmul.f32 %v1818, 1.442695
    %v1906 = vpow.pop %v1905
    %v1907 = vmul.f32 %v1819, 1.442695
    %v1908 = vpow.pop %v1907
    %v1909 = vmul.f32 %v1820, 1.442695
    %v1910 = vpow.pop %v1909
    %v1911 = vmul.f32 %v1821, 1.442695
    %v1912 = vpow.pop %v1911
    %v1913 = vmul.f32 %v1822, 1.442695
    %v1914 = vpow.pop %v1913
    %v1915 = vmul.f32 %v1823, 1.442695
    %v1916 = vpow.pop %v1915
    %v1917 = vmul.f32 %v1824, 1.442695
    %v1918 = vpow.pop %v1917
    %v1919 = vmul.f32 %v1825, 1.442695
    %v1920 = vpow.pop %v1919
    %v1921 = vmul.f32 %v1826, 1.442695
    %v1922 = vpow.pop %v1921
    %v1923 = vmul.f32 %v1827, 1.442695
    %v1924 = vpow.pop %v1923
    %v1925 = vmul.f32 %v1828, 1.442695
    %v1926 = vpow.pop %v1925
    %v1927 = vmul.f32 %v1829, 1.442695
    %v1928 = vpow.pop %v1927
    %v1929 = vmul.f32 %v1830, 1.442695
    %v1930 = vpow.pop %v1929
    %v1931 = vmul.f32 %v1831, 1.442695
    %v1932 = vpow.pop %v1931
    %v1933 = vmul.f32 %v1832, 1.442695
    %v1934 = vpow.pop %v1933
    %v1935 = vmul.f32 %v1833, 1.442695
    %v1936 = vpow.pop %v1935
    %v1937 = vmul.f32 %v1834, 1.442695
    %v1938 = vpow.pop %v1937
    %v1939 = vmul.f32 %v1835, 1.442695
    %v1940 = vpow.pop %v1939
    %v1941 = vmul.f32 %v1836, 1.442695
    %v1942 = vpow.pop %v1941
    %v1943 = vmul.f32 %v1837, 1.442695
    %v1944 = vpow.pop %v1943
    %v1945 = vmul.f32 %v1838, 1.442695
    %v1946 = vpow.pop %v1945
    %v1947 = vmul.f32 %v1839, 1.442695
    %v1948 = vpow.pop %v1947
    %v1949 = vmul.f32 %v1840, 1.442695
    %v1950 = vpow.pop %v1949
    %v1951 = vmul.f32 %v1841, 1.442695
    %v1952 = vpow.pop %v1951
    %v1953 = vmul.f32 %v1842, 1.442695
    %v1954 = vpow.pop %v1953
    %v1955 = vmul.f32 %v1843, 1.442695
    %v1956 = vpow.pop %v1955
    %v1957 = vmul.f32 %v1844, 1.442695
    %v1958 = vpow.pop %v1957
    %v1959 = vmul.f32 %v1845, 1.442695
    %v1960 = vpow.pop %v1959
    %v1961 = vmul.f32 %v1846, 1.442695
    %v1962 = vpow.pop %v1961
    %v1963 = vmul.f32 %v1847, 1.442695
    %v1964 = vpow.pop %v1963
    %v1965 = vmul.f32 %v1848, 1.442695
    %v1966 = vpow.pop %v1965
    %v1967 = vmul.f32 %v1849, 1.442695
    %v1968 = vpow.pop %v1967
    %v1969 = vmul.f32 %v1850, 1.442695
    %v1970 = vpow.pop %v1969
    %v1971 = vmul.f32 %v1851, 1.442695
    %v1972 = vpow.pop %v1971
    %v1973 = vmul.f32 %v1852, 1.442695
    %v1974 = vpow.pop %v1973
    %v1975 = vmul.f32 %v1853, 1.442695
    %v1976 = vpow.pop %v1975
    %v1977 = vmul.f32 %v1854, 1.442695
    %v1978 = vpow.pop %v1977
    %v1979 = vmul.f32 %v1855, 1.442695
    %v1980 = vpow.pop %v1979
    %v1981 = vmul.f32 %v1856, 1.442695
    %v1982 = vpow.pop %v1981
    %v1983 = vmul.f32 %v1857, 1.442695
    %v1984 = vpow.pop %v1983
    %v1985 = vmul.f32 %v1858, 1.442695
    %v1986 = vpow.pop %v1985
    %v1987 = vadd.f32 %v1860, %v1864
    %v1988 = vadd.f32 %v1987, %v1868
    %v1989 = vadd.f32 %v1988, %v1872
    %v1990 = vadd.f32 %v1989, %v1876
    %v1991 = vadd.f32 %v1990, %v1880
    %v1992 = vadd.f32 %v1991, %v1884
    %v1993 = vadd.f32 %v1992, %v1888
    %v1994 = vadd.f32 %v1993, %v1892
    %v1995 = vadd.f32 %v1994, %v1896
    %v1996 = vadd.f32 %v1995, %v1900
    %v1997 = vadd.f32 %v1996, %v1904
    %v1998 = vadd.f32 %v1997, %v1908
    %v1999 = vadd.f32 %v1998, %v1912
    %v2000 = vadd.f32 %v1999, %v1916
    %v2001 = vadd.f32 %v2000, %v1920
    %v2002 = vadd.f32 %v2001, %v1924
    %v2003 = vadd.f32 %v2002, %v1928
    %v2004 = vadd.f32 %v2003, %v1932
    %v2005 = vadd.f32 %v2004, %v1936
    %v2006 = vadd.f32 %v2005, %v1940
    %v2007 = vadd.f32 %v2006, %v1944
    %v2008 = vadd.f32 %v2007, %v1948
    %v2009 = vadd.f32 %v2008, %v1952
    %v2010 = vadd.f32 %v2009, %v1956
    %v2011 = vadd.f32 %v2010, %v1960
    %v2012 = vadd.f32 %v2011, %v1964
    %v2013 = vadd.f32 %v2012, %v1968
    %v2014 = vadd.f32 %v2013, %v1972
    %v2015 = vadd.f32 %v2014, %v1976
    %v2016 = vadd.f32 %v2015, %v1980
    %v2017 = vadd.f32 %v2016, %v1984
    %v2018 = vrot.slane %v2017, 4
    %v2019 = vadd.f32 %v2017, %v2018
    %v2020 = vrot.slane %v2019, 2
    %v2021 = vadd.f32 %v2019, %v2020
    %v2022 = vrot.slane %v2021, 1
    %v2023 = vadd.f32 %v2021, %v2022
    %v2024 = vadd.f32 %v1862, %v1866
    %v2025 = vadd.f32 %v2024, %v1870
    %v2026 = vadd.f32 %v2025, %v1874
    %v2027 = vadd.f32 %v2026, %v1878
    %v2028 = vadd.f32 %v2027, %v1882
    %v2029 = vadd.f32 %v2028, %v1886
    %v2030 = vadd.f32 %v2029, %v1890
    %v2031 = vadd.f32 %v2030, %v1894
    %v2032 = vadd.f32 %v2031, %v1898
    %v2033 = vadd.f32 %v2032, %v1902
    %v2034 = vadd.f32 %v2033, %v1906
    %v2035 = vadd.f32 %v2034, %v1910
    %v2036 = vadd.f32 %v2035, %v1914
    %v2037 = vadd.f32 %v2036, %v1918
    %v2038 = vadd.f32 %v2037, %v1922
    %v2039 = vadd.f32 %v2038, %v1926
    %v2040 = vadd.f32 %v2039, %v1930
    %v2041 = vadd.f32 %v2040, %v1934
    %v2042 = vadd.f32 %v2041, %v1938
    %v2043 = vadd.f32 %v2042, %v1942
    %v2044 = vadd.f32 %v2043, %v1946
    %v2045 = vadd.f32 %v2044, %v1950
    %v2046 = vadd.f32 %v2045, %v1954
    %v2047 = vadd.f32 %v2046, %v1958
    %v2048 = vadd.f32 %v2047, %v1962
    %v2049 = vadd.f32 %v2048, %v1966
    %v2050 = vadd.f32 %v2049, %v1970
    %v2051 = vadd.f32 %v2050, %v1974
    %v2052 = vadd.f32 %v2051, %v1978
    %v2053 = vadd.f32 %v2052, %v1982
    %v2054 = vadd.f32 %v2053, %v1986
    %v2055 = vrot.slane %v2054, 4
    %v2056 = vadd.f32 %v2054, %v2055
    %v2057 = vrot.slane %v2056, 2
    %v2058 = vadd.f32 %v2056, %v2057
    %v2059 = vrot.slane %v2058, 1
    %v2060 = vadd.f32 %v2058, %v2059
    %2061 = vmatprep.subr.mxu0 %v1862
    %2062 = vmatpush1.msra.mxu0 %v1860
    %2063 = vmatprep.subr.mxu0 %v1866
    %2064 = vmatpush1.msra.mxu0 %v1864
    %2065 = vmatprep.subr.mxu0 %v1870
    %2066 = vmatpush1.msra.mxu0 %v1868
    %2067 = vmatprep.subr.mxu0 %v1874
    %2068 = vmatpush1.msra.mxu0 %v1872
    %2069 = vmatprep.subr.mxu0 %v1878
    %2070 = vmatpush1.msra.mxu0 %v1876
    %2071 = vmatprep.subr.mxu0 %v1882
    %2072 = vmatpush1.msra.mxu0 %v1880
    %2073 = vmatprep.subr.mxu0 %v1886
    %2074 = vmatpush1.msra.mxu0 %v1884
    %2075 = vmatprep.subr.mxu0 %v1890
    %2076 = vmatpush1.msra.mxu0 %v1888
    %2077 = vmatprep.subr.mxu0 %v1894
    %2078 = vmatpush1.msra.mxu0 %v1892
    %2079 = vmatprep.subr.mxu0 %v1898
    %2080 = vmatpush1.msra.mxu0 %v1896
    %2081 = vmatprep.subr.mxu0 %v1902
    %2082 = vmatpush1.msra.mxu0 %v1900
    %2083 = vmatprep.subr.mxu0 %v1906
    %2084 = vmatpush1.msra.mxu0 %v1904
    %2085 = vmatprep.subr.mxu0 %v1910
    %2086 = vmatpush1.msra.mxu0 %v1908
    %2087 = vmatprep.subr.mxu0 %v1914
    %2088 = vmatpush1.msra.mxu0 %v1912
    %2089 = vmatprep.subr.mxu0 %v1918
    %2090 = vmatpush1.msra.mxu0 %v1916
    %2091 = vmatprep.subr.mxu0 %v1922
    %2092 = vmatpush1.msra.mxu0 %v1920
    %2093 = vmatprep.subr.mxu0 %v1926
    %2094 = vmatpush1.msra.mxu0 %v1924
    %2095 = vmatprep.subr.mxu0 %v1930
    %2096 = vmatpush1.msra.mxu0 %v1928
    %2097 = vmatprep.subr.mxu0 %v1934
    %2098 = vmatpush1.msra.mxu0 %v1932
    %2099 = vmatprep.subr.mxu0 %v1938
    %2100 = vmatpush1.msra.mxu0 %v1936
    %2101 = vmatprep.subr.mxu0 %v1942
    %2102 = vmatpush1.msra.mxu0 %v1940
    %2103 = vmatprep.subr.mxu0 %v1946
    %2104 = vmatpush1.msra.mxu0 %v1944
    %2105 = vmatprep.subr.mxu0 %v1950
    %2106 = vmatpush1.msra.mxu0 %v1948
    %2107 = vmatprep.subr.mxu0 %v1954
    %2108 = vmatpush1.msra.mxu0 %v1952
    %2109 = vmatprep.subr.mxu0 %v1958
    %2110 = vmatpush1.msra.mxu0 %v1956
    %2111 = vmatprep.subr.mxu0 %v1962
    %2112 = vmatpush1.msra.mxu0 %v1960
    %2113 = vmatprep.subr.mxu0 %v1966
    %2114 = vmatpush1.msra.mxu0 %v1964
    %2115 = vmatprep.subr.mxu0 %v1970
    %2116 = vmatpush1.msra.mxu0 %v1968
    %2117 = vmatprep.subr.mxu0 %v1974
    %2118 = vmatpush1.msra.mxu0 %v1972
    %2119 = vmatprep.subr.mxu0 %v1978
    %2120 = vmatpush1.msra.mxu0 %v1976
    %2121 = vmatprep.subr.mxu0 %v1982
    %2122 = vmatpush1.msra.mxu0 %v1980
    %2123 = vmatprep.subr.mxu0 %v1986
    %2124 = vmatpush1.msra.mxu0 %v1984
    %2125 = vmatprep.mubr.f32.mxu0 %v1215
    %2126 = vmatmul.mubr.f32.gmra.mrb[0].mxu0 %v1213
    %v2127 = vpop.f32.mrb[0].mxu0
    %v2128 = vadd.f32 0.0, %v2127
    %v2129 = vpop.f32.mrb[0].mxu0
    %v2130 = vadd.f32 0.0, %v2129
    %2131 = vmatprep.mubr.f32.mxu0 %v1221
    %2132 = vmatmul.mubr.f32.gmra.mrb[0].mxu0 %v1219
    %v2133 = vpop.f32.mrb[0].mxu0
    %v2134 = vadd.f32 0.0, %v2133
    %v2135 = vpop.f32.mrb[0].mxu0
    %v2136 = vadd.f32 0.0, %v2135
    %2137 = vdwg.mxu0
    %v2138 = vrcp.pop %v2023
    %v2139 = vrcp.pop %v2060
    %v2140 = vmul.f32 %v2128, %v2138
    %v2141 = vmul.f32 %v2130, %v2139
    %v2142 = vmul.f32 %v2134, %v2138
    %v2143 = vmul.f32 %v2136, %v2139
    %v2144 = vmul.f32 %v1087, %v2140
    %v2145 = vmul.f32 %v1087, %v2141
    %v2146 = vmul.f32 %v1087, %v2142
    %v2147 = vmul.f32 %v1087, %v2143
    %v2148 = vadd.f32 %v2144, %v1106
    %v2149 = vadd.f32 %v2145, %v1107
    %v2150 = vadd.f32 %v2146, %v1108
    %v2151 = vadd.f32 %v2147, %v1109
    %s2152 = scalar_lea.vmem [#allocation6], 32
    %2153 = vst [vmem:[%s2152] sm:$0xff] %v2148
    %2154 = vst [vmem:[%s2152 + $0x8] sm:$0xff] %v2149
    %2155 = vst [vmem:[%s2152 + $0x10] sm:$0xff] %v2150
    %2156 = vst [vmem:[%s2152 + $0x18] sm:$0xff] %v2151
    // Predicated region
    $region34: #{tpu_custom_call.1} parent=1 // pred_check
      _
    $region35: #{tpu_custom_call.1} parent=1 // pred_check_branch
      %2158 = sbr.rel (0) target = $region37
    $region36: #{tpu_custom_call.1} parent=1 // pred_region
      %s2160 = ssub.s32 1024, 1024
      %2161 = vsyncadd [#allocation5], %s2160
      %s2162 = sshll.u32 [#allocation6], 4
      %s2163 = int_to_ptr.vmem [resolvable:$true] %s2162
      %2168 = dma.vmem_to_hbm [thread:$0]  %s2163, 1024, %s7, [#allocation5], 256, 256, 16
    $region37: #{tpu_custom_call.1} parent=1 // pred_fallthru
      _
    // Predicated region
    $region38: #{tpu_custom_call.1} parent=1 // pred_check
      _
    $region39: #{tpu_custom_call.1} parent=1 // pred_check_branch
      %2170 = sbr.rel (0) target = $region41
    $region40: #{tpu_custom_call.1} parent=1 // pred_region
      %2171 = dma.done [#allocation5], 1024
    $region41: #{tpu_custom_call.1} parent=1 // pred_fallthru
      _
    %2172 = vsyncpa [#allocation4], 1
    %2173 = vsyncpa [#allocation5], 1

</llo_original>
